<compile_context>
chip_gen: v6e
topology: v6e:2x2x1
jax: 0.10.0
libtpu: 0.0.40
codegen_flags: <defaults>
</compile_context>

<pallas_src>
from functools import partial

import jax
import jax.numpy as jnp
from jax.experimental import pallas as pl
from jax.experimental.pallas import tpu as pltpu


def _decoder_kernel(x_ref, wih_ref, whh_ref, b_ref, wlin_ref, blin_ref, y_ref,
                    *, T, B):
    D = x_ref.shape[-1]
    H = whh_ref.shape[0]

    # --- Hoisted input projection (row-order independent): one bf16 matmul.
    x_bt = x_ref[...].astype(wih_ref.dtype)                       # (B*T, D) bf16
    pre_bt = jnp.dot(x_bt, wih_ref[...],
                     preferred_element_type=jnp.float32) + b_ref[...]  # (B*T, 4H) f32

    # Register-resident, time-major pre-gate slabs (static slices; not on the
    # serial critical path, the scheduler can hoist them ahead of the loop).
    pre_steps = [
        jnp.concatenate(
            [pre_bt[b * T + t: b * T + t + 1, :] for b in range(B)], axis=0)
        for t in range(T)
    ]                                                             # T x (B, 4H)

    whh = whh_ref[...]                                            # (H, 4H) bf16
    h = jnp.zeros((B, H), jnp.float32)
    c = jnp.zeros((B, H), jnp.float32)
    h_steps = []

    # Static unroll over time: only the bf16 recurrent matmul + one tanh over
    # the full 4H gate slab + VPU fmas are on the per-step serial path.
    for t in range(T):
        rec = jnp.dot(h.astype(whh.dtype), whh,
                      preferred_element_type=jnp.float32)         # (B, 4H) f32
        gates = pre_steps[t] + rec                                # [i,f,o,g]; i/f/o pre-scaled by 0.5
        tg = jnp.tanh(gates)                                      # ONE EUP dispatch over 4H
        iof = 0.5 * tg[:, :3 * H] + 0.5                           # sigmoid via tanh identity
        i_g = iof[:, 0 * H:1 * H]
        f_g = iof[:, 1 * H:2 * H]
        o_g = iof[:, 2 * H:3 * H]
        g_g = tg[:, 3 * H:]
        c = f_g * c + i_g * g_g
        h = o_g * jnp.tanh(c)
        h_steps.append(h)

    # Re-pack h_t into batch-major (B*T, H) row order: row b*T + t = h_t[b].
    hs_bt = jnp.concatenate(
        [h_steps[t][b: b + 1, :] for b in range(B) for t in range(T)], axis=0)

    # --- Hoisted dec_net Linear: one bf16 matmul + single dense (B*T, H) store.
    y = jnp.dot(hs_bt.astype(wlin_ref.dtype), wlin_ref[...],
                preferred_element_type=jnp.float32) + blin_ref[...]
    y_ref[...] = y.astype(y_ref.dtype)


def _prep_gate_matrix(w, H):
    """Permute trailing 4H axis from PyTorch [i,f,g,o] to [i,f,o,g] and fold a
    0.5 pre-scale into the i/f/o blocks (single-tanh gate formulation)."""
    w4 = w.reshape(w.shape[:-1] + (4, H))
    i, f, g, o = w4[..., 0, :], w4[..., 1, :], w4[..., 2, :], w4[..., 3, :]
    out = jnp.stack([0.5 * i, 0.5 * f, 0.5 * o, g], axis=-2)
    return out.reshape(w.shape)


def prepare_params(params):
    """One-time host-side parameter prep: gate reorder + 0.5 fold + bias fold +
    bf16 cast of all matmul operands (accumulation stays f32 in-kernel)."""
    H = params["whh_t"].shape[0]
    wih = _prep_gate_matrix(params["wih_t"], H).astype(jnp.bfloat16)    # (D, 4H)
    whh = _prep_gate_matrix(params["whh_t"], H).astype(jnp.bfloat16)    # (H, 4H)
    b = _prep_gate_matrix(
        (params["b_ih"] + params["b_hh"]).reshape(1, 4 * H), H)         # (1, 4H) f32
    wlin = params["wlin_t"].astype(jnp.bfloat16)                        # (H, H)
    blin = params["b_lin"].reshape(1, H)                                # (1, H) f32
    return wih, whh, b, wlin, blin


def decoder_forward(x, prepped):
    """x: (B, T, D) with D = f_dim + z_dim. Returns (B, T, H), H = fft_size//2+1."""
    B, T, D = x.shape
    wih, whh, b, wlin, blin = prepped
    H = whh.shape[0]
    H4 = 4 * H

    x_flat = x.reshape(B * T, D)            # free row-major metadata reshape

    cost = pl.CostEstimate(
        flops=2 * B * T * D * H4 + 2 * B * T * H * H4 + 2 * B * T * H * H,
        transcendentals=B * T * (H4 + H),
        bytes_accessed=(B * T * D * 4 + D * H4 * 2 + H * H4 * 2 + H4 * 4
                        + H * H * 2 + H * 4 + B * T * H * 4),
    )

    y_flat = pl.pallas_call(
        partial(_decoder_kernel, T=T, B=B),
        out_shape=jax.ShapeDtypeStruct((B * T, H), jnp.float32),
        grid_spec=pltpu.PrefetchScalarGridSpec(
            num_scalar_prefetch=0,
            grid=(1,),
            in_specs=[
                pl.BlockSpec((B * T, D), lambda i: (0, 0)),   # x, batch-major rows
                pl.BlockSpec((D, H4), lambda i: (0, 0)),      # W_ih^T (bf16, prepped)
                pl.BlockSpec((H, H4), lambda i: (0, 0)),      # W_hh^T (bf16, prepped)
                pl.BlockSpec((1, H4), lambda i: (0, 0)),      # folded bias (f32)
                pl.BlockSpec((H, H), lambda i: (0, 0)),       # W_lin^T (bf16)
                pl.BlockSpec((1, H), lambda i: (0, 0)),       # b_lin (f32)
            ],
            out_specs=pl.BlockSpec((B * T, H), lambda i: (0, 0)),
        ),
        compiler_params=pltpu.CompilerParams(
            dimension_semantics=("arbitrary",)),
        cost_estimate=cost,
    )(x_flat, wih, whh, b, wlin, blin)

    return y_flat.reshape(B, T, H)          # free metadata reshape


def make_params(key, in_dim, hidden):
    """PyTorch shapes: W_ih (4H, D), W_hh (4H, H), b_* (4H,), Linear W (H, H), b (H,).
    Stored transposed for right-multiplication; gate order is PyTorch's [i,f,g,o]."""
    ks = jax.random.split(key, 6)
    s = 1.0 / jnp.sqrt(hidden)
    u = lambda k, shape: jax.random.uniform(k, shape, jnp.float32, -s, s)
    return {
        "wih_t": u(ks[0], (in_dim, 4 * hidden)),
        "whh_t": u(ks[1], (hidden, 4 * hidden)),
        "b_ih": u(ks[2], (4 * hidden,)),
        "b_hh": u(ks[3], (4 * hidden,)),
        "wlin_t": u(ks[4], (hidden, hidden)),
        "b_lin": u(ks[5], (hidden,)),
    }


def ref_forward(x, params):
    """Pure-JAX f32 reference of nn.LSTM (single layer, batch_first) + Linear."""
    H = params["whh_t"].shape[0]
    B = x.shape[0]

    def step(carry, x_t):
        h, c = carry
        gates = (x_t @ params["wih_t"] + params["b_ih"]
                 + h @ params["whh_t"] + params["b_hh"])
        i, f, g, o = jnp.split(gates, 4, axis=-1)
        i, f, g, o = jax.nn.sigmoid(i), jax.nn.sigmoid(f), jnp.tanh(g), jax.nn.sigmoid(o)
        c = f * c + i * g
        h = o * jnp.tanh(c)
        return (h, c), h

    h0 = jnp.zeros((B, H), jnp.float32)
    c0 = jnp.zeros((B, H), jnp.float32)
    _, hs = jax.lax.scan(step, (h0, c0), jnp.transpose(x, (1, 0, 2)))
    hs = jnp.transpose(hs, (1, 0, 2))                            # (B, T, H)
    return hs @ params["wlin_t"] + params["b_lin"]


if __name__ == "__main__":
    # opt: f_dim=16, z_dim=16 -> LSTM input 32; fft_size=254 -> hidden = 128.
    B, T = 2, 8
    f_dim, z_dim, fft_size = 16, 16, 254
    D = f_dim + z_dim
    H = fft_size // 2 + 1

    key = jax.random.PRNGKey(0)
    kx, kp = jax.random.split(key)
    x = jax.random.normal(kx, (B, T, D), jnp.float32)
    params = make_params(kp, D, H)
    prepped = prepare_params(params)        # one-time weight prep (outside hot path)

    fwd = jax.jit(decoder_forward)
    y = jax.block_until_ready(fwd(x, prepped))

    y_ref = jax.block_until_ready(ref_forward(x, params))
    assert y.shape == (B, T, H), y.shape
    err = float(jnp.max(jnp.abs(y - y_ref)))
    # Tolerance accounts for bf16 MXU operands on all three matmuls (f32 acc);
    # observed error vs the f32 reference is a few 1e-3.
    assert jnp.allclose(y, y_ref, atol=2e-2, rtol=2e-2), err

    print("KERNEL_OK")
</pallas_src>

<mosaic_0001>
module attributes {stable_mosaic.version = 11 : i64} {
  func.func @_decoder_kernel(%arg0: i32, %arg1: memref<16x32xf32, #tpu.memory_space<vmem>>, %arg2: memref<32x512xbf16, #tpu.memory_space<vmem>>, %arg3: memref<128x512xbf16, #tpu.memory_space<vmem>>, %arg4: memref<1x512xf32, #tpu.memory_space<vmem>>, %arg5: memref<128x128xbf16, #tpu.memory_space<vmem>>, %arg6: memref<1x128xf32, #tpu.memory_space<vmem>>, %arg7: memref<16x128xf32, #tpu.memory_space<vmem>>) attributes {dimension_semantics = [#tpu.dimension_semantics<arbitrary>], iteration_bounds = array<i64: 1>, scalar_prefetch = 0 : i64, scratch_operands = 0 : i64, tpu.core_type = #tpu.core_type<tc>, window_params = [{pipeline_mode = #tpu.pipeline_mode<synchronous>, transform_indices = @transform_0, window_bounds = array<i64: 16, 32>}, {pipeline_mode = #tpu.pipeline_mode<synchronous>, transform_indices = @transform_1, window_bounds = array<i64: 32, 512>}, {pipeline_mode = #tpu.pipeline_mode<synchronous>, transform_indices = @transform_2, window_bounds = array<i64: 128, 512>}, {pipeline_mode = #tpu.pipeline_mode<synchronous>, transform_indices = @transform_3, window_bounds = array<i64: 1, 512>}, {pipeline_mode = #tpu.pipeline_mode<synchronous>, transform_indices = @transform_4, window_bounds = array<i64: 128, 128>}, {pipeline_mode = #tpu.pipeline_mode<synchronous>, transform_indices = @transform_5, window_bounds = array<i64: 1, 128>}, {pipeline_mode = #tpu.pipeline_mode<synchronous>, transform_indices = @transform_6, window_bounds = array<i64: 16, 128>}]} {
    %c0 = arith.constant 0 : index
    %c0_0 = arith.constant 0 : index
    %0 = vector.load %arg1[%c0, %c0_0] : memref<16x32xf32, #tpu.memory_space<vmem>>, vector<16x32xf32>
    %1 = arith.truncf %0 : vector<16x32xf32> to vector<16x32xbf16>
    %c0_1 = arith.constant 0 : index
    %c0_2 = arith.constant 0 : index
    %2 = vector.load %arg2[%c0_1, %c0_2] : memref<32x512xbf16, #tpu.memory_space<vmem>>, vector<32x512xbf16>
    %cst = arith.constant dense<0.000000e+00> : vector<16x512xf32>
    %3 = tpu.matmul %1, %2, %cst {dimension_numbers = #tpu.dot_dimension_numbers<[1], [0], [0], [1], [0, 0, 1, 1], [], []>} : vector<16x32xbf16>, vector<32x512xbf16>, vector<16x512xf32> -> vector<16x512xf32>
    %c0_3 = arith.constant 0 : index
    %c0_4 = arith.constant 0 : index
    %4 = vector.load %arg4[%c0_3, %c0_4] : memref<1x512xf32, #tpu.memory_space<vmem>>, vector<1x512xf32>
    %5 = vector.broadcast %4 : vector<1x512xf32> to vector<16x512xf32>
    %6 = arith.addf %3, %5 : vector<16x512xf32>
    %7 = vector.extract_strided_slice %6 {offsets = [0, 0], sizes = [1, 512], strides = [1, 1]} : vector<16x512xf32> to vector<1x512xf32>
    %8 = vector.extract_strided_slice %6 {offsets = [8, 0], sizes = [1, 512], strides = [1, 1]} : vector<16x512xf32> to vector<1x512xf32>
    %9 = tpu.concatenate %7, %8 in 0 : vector<1x512xf32>, vector<1x512xf32> -> vector<2x512xf32>
    %10 = vector.extract_strided_slice %6 {offsets = [1, 0], sizes = [1, 512], strides = [1, 1]} : vector<16x512xf32> to vector<1x512xf32>
    %11 = vector.extract_strided_slice %6 {offsets = [9, 0], sizes = [1, 512], strides = [1, 1]} : vector<16x512xf32> to vector<1x512xf32>
    %12 = tpu.concatenate %10, %11 in 0 : vector<1x512xf32>, vector<1x512xf32> -> vector<2x512xf32>
    %13 = vector.extract_strided_slice %6 {offsets = [2, 0], sizes = [1, 512], strides = [1, 1]} : vector<16x512xf32> to vector<1x512xf32>
    %14 = vector.extract_strided_slice %6 {offsets = [10, 0], sizes = [1, 512], strides = [1, 1]} : vector<16x512xf32> to vector<1x512xf32>
    %15 = tpu.concatenate %13, %14 in 0 : vector<1x512xf32>, vector<1x512xf32> -> vector<2x512xf32>
    %16 = vector.extract_strided_slice %6 {offsets = [3, 0], sizes = [1, 512], strides = [1, 1]} : vector<16x512xf32> to vector<1x512xf32>
    %17 = vector.extract_strided_slice %6 {offsets = [11, 0], sizes = [1, 512], strides = [1, 1]} : vector<16x512xf32> to vector<1x512xf32>
    %18 = tpu.concatenate %16, %17 in 0 : vector<1x512xf32>, vector<1x512xf32> -> vector<2x512xf32>
    %19 = vector.extract_strided_slice %6 {offsets = [4, 0], sizes = [1, 512], strides = [1, 1]} : vector<16x512xf32> to vector<1x512xf32>
    %20 = vector.extract_strided_slice %6 {offsets = [12, 0], sizes = [1, 512], strides = [1, 1]} : vector<16x512xf32> to vector<1x512xf32>
    %21 = tpu.concatenate %19, %20 in 0 : vector<1x512xf32>, vector<1x512xf32> -> vector<2x512xf32>
    %22 = vector.extract_strided_slice %6 {offsets = [5, 0], sizes = [1, 512], strides = [1, 1]} : vector<16x512xf32> to vector<1x512xf32>
    %23 = vector.extract_strided_slice %6 {offsets = [13, 0], sizes = [1, 512], strides = [1, 1]} : vector<16x512xf32> to vector<1x512xf32>
    %24 = tpu.concatenate %22, %23 in 0 : vector<1x512xf32>, vector<1x512xf32> -> vector<2x512xf32>
    %25 = vector.extract_strided_slice %6 {offsets = [6, 0], sizes = [1, 512], strides = [1, 1]} : vector<16x512xf32> to vector<1x512xf32>
    %26 = vector.extract_strided_slice %6 {offsets = [14, 0], sizes = [1, 512], strides = [1, 1]} : vector<16x512xf32> to vector<1x512xf32>
    %27 = tpu.concatenate %25, %26 in 0 : vector<1x512xf32>, vector<1x512xf32> -> vector<2x512xf32>
    %28 = vector.extract_strided_slice %6 {offsets = [7, 0], sizes = [1, 512], strides = [1, 1]} : vector<16x512xf32> to vector<1x512xf32>
    %29 = vector.extract_strided_slice %6 {offsets = [15, 0], sizes = [1, 512], strides = [1, 1]} : vector<16x512xf32> to vector<1x512xf32>
    %30 = tpu.concatenate %28, %29 in 0 : vector<1x512xf32>, vector<1x512xf32> -> vector<2x512xf32>
    %c0_5 = arith.constant 0 : index
    %c0_6 = arith.constant 0 : index
    %31 = vector.load %arg3[%c0_5, %c0_6] : memref<128x512xbf16, #tpu.memory_space<vmem>>, vector<128x512xbf16>
    %cst_7 = arith.constant 0.000000e+00 : f32
    %32 = vector.broadcast %cst_7 : f32 to vector<2x128xf32>
    %cst_8 = arith.constant 0.000000e+00 : f32
    %33 = vector.broadcast %cst_8 : f32 to vector<2x128xf32>
    %34 = arith.truncf %32 : vector<2x128xf32> to vector<2x128xbf16>
    %cst_9 = arith.constant dense<0.000000e+00> : vector<2x512xf32>
    %35 = tpu.matmul %34, %31, %cst_9 {dimension_numbers = #tpu.dot_dimension_numbers<[1], [0], [0], [1], [0, 0, 1, 1], [], []>} : vector<2x128xbf16>, vector<128x512xbf16>, vector<2x512xf32> -> vector<2x512xf32>
    %36 = arith.addf %9, %35 : vector<2x512xf32>
    %37 = math.tanh %36 : vector<2x512xf32>
    %38 = vector.extract_strided_slice %37 {offsets = [0, 0], sizes = [2, 384], strides = [1, 1]} : vector<2x512xf32> to vector<2x384xf32>
    %cst_10 = arith.constant 5.000000e-01 : f32
    %39 = vector.broadcast %cst_10 : f32 to vector<2x384xf32>
    %40 = arith.mulf %39, %38 : vector<2x384xf32>
    %cst_11 = arith.constant 5.000000e-01 : f32
    %41 = vector.broadcast %cst_11 : f32 to vector<2x384xf32>
    %42 = arith.addf %40, %41 : vector<2x384xf32>
    %43 = vector.extract_strided_slice %42 {offsets = [0, 0], sizes = [2, 128], strides = [1, 1]} : vector<2x384xf32> to vector<2x128xf32>
    %44 = vector.extract_strided_slice %42 {offsets = [0, 128], sizes = [2, 128], strides = [1, 1]} : vector<2x384xf32> to vector<2x128xf32>
    %45 = vector.extract_strided_slice %42 {offsets = [0, 256], sizes = [2, 128], strides = [1, 1]} : vector<2x384xf32> to vector<2x128xf32>
    %46 = vector.extract_strided_slice %37 {offsets = [0, 384], sizes = [2, 128], strides = [1, 1]} : vector<2x512xf32> to vector<2x128xf32>
    %47 = arith.mulf %44, %33 : vector<2x128xf32>
    %48 = arith.mulf %43, %46 : vector<2x128xf32>
    %49 = arith.addf %47, %48 : vector<2x128xf32>
    %50 = math.tanh %49 : vector<2x128xf32>
    %51 = arith.mulf %45, %50 : vector<2x128xf32>
    %52 = arith.truncf %51 : vector<2x128xf32> to vector<2x128xbf16>
    %cst_12 = arith.constant dense<0.000000e+00> : vector<2x512xf32>
    %53 = tpu.matmul %52, %31, %cst_12 {dimension_numbers = #tpu.dot_dimension_numbers<[1], [0], [0], [1], [0, 0, 1, 1], [], []>} : vector<2x128xbf16>, vector<128x512xbf16>, vector<2x512xf32> -> vector<2x512xf32>
    %54 = arith.addf %12, %53 : vector<2x512xf32>
    %55 = math.tanh %54 : vector<2x512xf32>
    %56 = vector.extract_strided_slice %55 {offsets = [0, 0], sizes = [2, 384], strides = [1, 1]} : vector<2x512xf32> to vector<2x384xf32>
    %cst_13 = arith.constant 5.000000e-01 : f32
    %57 = vector.broadcast %cst_13 : f32 to vector<2x384xf32>
    %58 = arith.mulf %57, %56 : vector<2x384xf32>
    %cst_14 = arith.constant 5.000000e-01 : f32
    %59 = vector.broadcast %cst_14 : f32 to vector<2x384xf32>
    %60 = arith.addf %58, %59 : vector<2x384xf32>
    %61 = vector.extract_strided_slice %60 {offsets = [0, 0], sizes = [2, 128], strides = [1, 1]} : vector<2x384xf32> to vector<2x128xf32>
    %62 = vector.extract_strided_slice %60 {offsets = [0, 128], sizes = [2, 128], strides = [1, 1]} : vector<2x384xf32> to vector<2x128xf32>
    %63 = vector.extract_strided_slice %60 {offsets = [0, 256], sizes = [2, 128], strides = [1, 1]} : vector<2x384xf32> to vector<2x128xf32>
    %64 = vector.extract_strided_slice %55 {offsets = [0, 384], sizes = [2, 128], strides = [1, 1]} : vector<2x512xf32> to vector<2x128xf32>
    %65 = arith.mulf %62, %49 : vector<2x128xf32>
    %66 = arith.mulf %61, %64 : vector<2x128xf32>
    %67 = arith.addf %65, %66 : vector<2x128xf32>
    %68 = math.tanh %67 : vector<2x128xf32>
    %69 = arith.mulf %63, %68 : vector<2x128xf32>
    %70 = arith.truncf %69 : vector<2x128xf32> to vector<2x128xbf16>
    %cst_15 = arith.constant dense<0.000000e+00> : vector<2x512xf32>
    %71 = tpu.matmul %70, %31, %cst_15 {dimension_numbers = #tpu.dot_dimension_numbers<[1], [0], [0], [1], [0, 0, 1, 1], [], []>} : vector<2x128xbf16>, vector<128x512xbf16>, vector<2x512xf32> -> vector<2x512xf32>
    %72 = arith.addf %15, %71 : vector<2x512xf32>
    %73 = math.tanh %72 : vector<2x512xf32>
    %74 = vector.extract_strided_slice %73 {offsets = [0, 0], sizes = [2, 384], strides = [1, 1]} : vector<2x512xf32> to vector<2x384xf32>
    %cst_16 = arith.constant 5.000000e-01 : f32
    %75 = vector.broadcast %cst_16 : f32 to vector<2x384xf32>
    %76 = arith.mulf %75, %74 : vector<2x384xf32>
    %cst_17 = arith.constant 5.000000e-01 : f32
    %77 = vector.broadcast %cst_17 : f32 to vector<2x384xf32>
    %78 = arith.addf %76, %77 : vector<2x384xf32>
    %79 = vector.extract_strided_slice %78 {offsets = [0, 0], sizes = [2, 128], strides = [1, 1]} : vector<2x384xf32> to vector<2x128xf32>
    %80 = vector.extract_strided_slice %78 {offsets = [0, 128], sizes = [2, 128], strides = [1, 1]} : vector<2x384xf32> to vector<2x128xf32>
    %81 = vector.extract_strided_slice %78 {offsets = [0, 256], sizes = [2, 128], strides = [1, 1]} : vector<2x384xf32> to vector<2x128xf32>
    %82 = vector.extract_strided_slice %73 {offsets = [0, 384], sizes = [2, 128], strides = [1, 1]} : vector<2x512xf32> to vector<2x128xf32>
    %83 = arith.mulf %80, %67 : vector<2x128xf32>
    %84 = arith.mulf %79, %82 : vector<2x128xf32>
    %85 = arith.addf %83, %84 : vector<2x128xf32>
    %86 = math.tanh %85 : vector<2x128xf32>
    %87 = arith.mulf %81, %86 : vector<2x128xf32>
    %88 = arith.truncf %87 : vector<2x128xf32> to vector<2x128xbf16>
    %cst_18 = arith.constant dense<0.000000e+00> : vector<2x512xf32>
    %89 = tpu.matmul %88, %31, %cst_18 {dimension_numbers = #tpu.dot_dimension_numbers<[1], [0], [0], [1], [0, 0, 1, 1], [], []>} : vector<2x128xbf16>, vector<128x512xbf16>, vector<2x512xf32> -> vector<2x512xf32>
    %90 = arith.addf %18, %89 : vector<2x512xf32>
    %91 = math.tanh %90 : vector<2x512xf32>
    %92 = vector.extract_strided_slice %91 {offsets = [0, 0], sizes = [2, 384], strides = [1, 1]} : vector<2x512xf32> to vector<2x384xf32>
    %cst_19 = arith.constant 5.000000e-01 : f32
    %93 = vector.broadcast %cst_19 : f32 to vector<2x384xf32>
    %94 = arith.mulf %93, %92 : vector<2x384xf32>
    %cst_20 = arith.constant 5.000000e-01 : f32
    %95 = vector.broadcast %cst_20 : f32 to vector<2x384xf32>
    %96 = arith.addf %94, %95 : vector<2x384xf32>
    %97 = vector.extract_strided_slice %96 {offsets = [0, 0], sizes = [2, 128], strides = [1, 1]} : vector<2x384xf32> to vector<2x128xf32>
    %98 = vector.extract_strided_slice %96 {offsets = [0, 128], sizes = [2, 128], strides = [1, 1]} : vector<2x384xf32> to vector<2x128xf32>
    %99 = vector.extract_strided_slice %96 {offsets = [0, 256], sizes = [2, 128], strides = [1, 1]} : vector<2x384xf32> to vector<2x128xf32>
    %100 = vector.extract_strided_slice %91 {offsets = [0, 384], sizes = [2, 128], strides = [1, 1]} : vector<2x512xf32> to vector<2x128xf32>
    %101 = arith.mulf %98, %85 : vector<2x128xf32>
    %102 = arith.mulf %97, %100 : vector<2x128xf32>
    %103 = arith.addf %101, %102 : vector<2x128xf32>
    %104 = math.tanh %103 : vector<2x128xf32>
    %105 = arith.mulf %99, %104 : vector<2x128xf32>
    %106 = arith.truncf %105 : vector<2x128xf32> to vector<2x128xbf16>
    %cst_21 = arith.constant dense<0.000000e+00> : vector<2x512xf32>
    %107 = tpu.matmul %106, %31, %cst_21 {dimension_numbers = #tpu.dot_dimension_numbers<[1], [0], [0], [1], [0, 0, 1, 1], [], []>} : vector<2x128xbf16>, vector<128x512xbf16>, vector<2x512xf32> -> vector<2x512xf32>
    %108 = arith.addf %21, %107 : vector<2x512xf32>
    %109 = math.tanh %108 : vector<2x512xf32>
    %110 = vector.extract_strided_slice %109 {offsets = [0, 0], sizes = [2, 384], strides = [1, 1]} : vector<2x512xf32> to vector<2x384xf32>
    %cst_22 = arith.constant 5.000000e-01 : f32
    %111 = vector.broadcast %cst_22 : f32 to vector<2x384xf32>
    %112 = arith.mulf %111, %110 : vector<2x384xf32>
    %cst_23 = arith.constant 5.000000e-01 : f32
    %113 = vector.broadcast %cst_23 : f32 to vector<2x384xf32>
    %114 = arith.addf %112, %113 : vector<2x384xf32>
    %115 = vector.extract_strided_slice %114 {offsets = [0, 0], sizes = [2, 128], strides = [1, 1]} : vector<2x384xf32> to vector<2x128xf32>
    %116 = vector.extract_strided_slice %114 {offsets = [0, 128], sizes = [2, 128], strides = [1, 1]} : vector<2x384xf32> to vector<2x128xf32>
    %117 = vector.extract_strided_slice %114 {offsets = [0, 256], sizes = [2, 128], strides = [1, 1]} : vector<2x384xf32> to vector<2x128xf32>
    %118 = vector.extract_strided_slice %109 {offsets = [0, 384], sizes = [2, 128], strides = [1, 1]} : vector<2x512xf32> to vector<2x128xf32>
    %119 = arith.mulf %116, %103 : vector<2x128xf32>
    %120 = arith.mulf %115, %118 : vector<2x128xf32>
    %121 = arith.addf %119, %120 : vector<2x128xf32>
    %122 = math.tanh %121 : vector<2x128xf32>
    %123 = arith.mulf %117, %122 : vector<2x128xf32>
    %124 = arith.truncf %123 : vector<2x128xf32> to vector<2x128xbf16>
    %cst_24 = arith.constant dense<0.000000e+00> : vector<2x512xf32>
    %125 = tpu.matmul %124, %31, %cst_24 {dimension_numbers = #tpu.dot_dimension_numbers<[1], [0], [0], [1], [0, 0, 1, 1], [], []>} : vector<2x128xbf16>, vector<128x512xbf16>, vector<2x512xf32> -> vector<2x512xf32>
    %126 = arith.addf %24, %125 : vector<2x512xf32>
    %127 = math.tanh %126 : vector<2x512xf32>
    %128 = vector.extract_strided_slice %127 {offsets = [0, 0], sizes = [2, 384], strides = [1, 1]} : vector<2x512xf32> to vector<2x384xf32>
    %cst_25 = arith.constant 5.000000e-01 : f32
    %129 = vector.broadcast %cst_25 : f32 to vector<2x384xf32>
    %130 = arith.mulf %129, %128 : vector<2x384xf32>
    %cst_26 = arith.constant 5.000000e-01 : f32
    %131 = vector.broadcast %cst_26 : f32 to vector<2x384xf32>
    %132 = arith.addf %130, %131 : vector<2x384xf32>
    %133 = vector.extract_strided_slice %132 {offsets = [0, 0], sizes = [2, 128], strides = [1, 1]} : vector<2x384xf32> to vector<2x128xf32>
    %134 = vector.extract_strided_slice %132 {offsets = [0, 128], sizes = [2, 128], strides = [1, 1]} : vector<2x384xf32> to vector<2x128xf32>
    %135 = vector.extract_strided_slice %132 {offsets = [0, 256], sizes = [2, 128], strides = [1, 1]} : vector<2x384xf32> to vector<2x128xf32>
    %136 = vector.extract_strided_slice %127 {offsets = [0, 384], sizes = [2, 128], strides = [1, 1]} : vector<2x512xf32> to vector<2x128xf32>
    %137 = arith.mulf %134, %121 : vector<2x128xf32>
    %138 = arith.mulf %133, %136 : vector<2x128xf32>
    %139 = arith.addf %137, %138 : vector<2x128xf32>
    %140 = math.tanh %139 : vector<2x128xf32>
    %141 = arith.mulf %135, %140 : vector<2x128xf32>
    %142 = arith.truncf %141 : vector<2x128xf32> to vector<2x128xbf16>
    %cst_27 = arith.constant dense<0.000000e+00> : vector<2x512xf32>
    %143 = tpu.matmul %142, %31, %cst_27 {dimension_numbers = #tpu.dot_dimension_numbers<[1], [0], [0], [1], [0, 0, 1, 1], [], []>} : vector<2x128xbf16>, vector<128x512xbf16>, vector<2x512xf32> -> vector<2x512xf32>
    %144 = arith.addf %27, %143 : vector<2x512xf32>
    %145 = math.tanh %144 : vector<2x512xf32>
    %146 = vector.extract_strided_slice %145 {offsets = [0, 0], sizes = [2, 384], strides = [1, 1]} : vector<2x512xf32> to vector<2x384xf32>
    %cst_28 = arith.constant 5.000000e-01 : f32
    %147 = vector.broadcast %cst_28 : f32 to vector<2x384xf32>
    %148 = arith.mulf %147, %146 : vector<2x384xf32>
    %cst_29 = arith.constant 5.000000e-01 : f32
    %149 = vector.broadcast %cst_29 : f32 to vector<2x384xf32>
    %150 = arith.addf %148, %149 : vector<2x384xf32>
    %151 = vector.extract_strided_slice %150 {offsets = [0, 0], sizes = [2, 128], strides = [1, 1]} : vector<2x384xf32> to vector<2x128xf32>
    %152 = vector.extract_strided_slice %150 {offsets = [0, 128], sizes = [2, 128], strides = [1, 1]} : vector<2x384xf32> to vector<2x128xf32>
    %153 = vector.extract_strided_slice %150 {offsets = [0, 256], sizes = [2, 128], strides = [1, 1]} : vector<2x384xf32> to vector<2x128xf32>
    %154 = vector.extract_strided_slice %145 {offsets = [0, 384], sizes = [2, 128], strides = [1, 1]} : vector<2x512xf32> to vector<2x128xf32>
    %155 = arith.mulf %152, %139 : vector<2x128xf32>
    %156 = arith.mulf %151, %154 : vector<2x128xf32>
    %157 = arith.addf %155, %156 : vector<2x128xf32>
    %158 = math.tanh %157 : vector<2x128xf32>
    %159 = arith.mulf %153, %158 : vector<2x128xf32>
    %160 = arith.truncf %159 : vector<2x128xf32> to vector<2x128xbf16>
    %cst_30 = arith.constant dense<0.000000e+00> : vector<2x512xf32>
    %161 = tpu.matmul %160, %31, %cst_30 {dimension_numbers = #tpu.dot_dimension_numbers<[1], [0], [0], [1], [0, 0, 1, 1], [], []>} : vector<2x128xbf16>, vector<128x512xbf16>, vector<2x512xf32> -> vector<2x512xf32>
    %162 = arith.addf %30, %161 : vector<2x512xf32>
    %163 = math.tanh %162 : vector<2x512xf32>
    %164 = vector.extract_strided_slice %163 {offsets = [0, 0], sizes = [2, 384], strides = [1, 1]} : vector<2x512xf32> to vector<2x384xf32>
    %cst_31 = arith.constant 5.000000e-01 : f32
    %165 = vector.broadcast %cst_31 : f32 to vector<2x384xf32>
    %166 = arith.mulf %165, %164 : vector<2x384xf32>
    %cst_32 = arith.constant 5.000000e-01 : f32
    %167 = vector.broadcast %cst_32 : f32 to vector<2x384xf32>
    %168 = arith.addf %166, %167 : vector<2x384xf32>
    %169 = vector.extract_strided_slice %168 {offsets = [0, 0], sizes = [2, 128], strides = [1, 1]} : vector<2x384xf32> to vector<2x128xf32>
    %170 = vector.extract_strided_slice %168 {offsets = [0, 128], sizes = [2, 128], strides = [1, 1]} : vector<2x384xf32> to vector<2x128xf32>
    %171 = vector.extract_strided_slice %168 {offsets = [0, 256], sizes = [2, 128], strides = [1, 1]} : vector<2x384xf32> to vector<2x128xf32>
    %172 = vector.extract_strided_slice %163 {offsets = [0, 384], sizes = [2, 128], strides = [1, 1]} : vector<2x512xf32> to vector<2x128xf32>
    %173 = arith.mulf %170, %157 : vector<2x128xf32>
    %174 = arith.mulf %169, %172 : vector<2x128xf32>
    %175 = arith.addf %173, %174 : vector<2x128xf32>
    %176 = math.tanh %175 : vector<2x128xf32>
    %177 = arith.mulf %171, %176 : vector<2x128xf32>
    %178 = vector.extract_strided_slice %51 {offsets = [0, 0], sizes = [1, 128], strides = [1, 1]} : vector<2x128xf32> to vector<1x128xf32>
    %179 = vector.extract_strided_slice %69 {offsets = [0, 0], sizes = [1, 128], strides = [1, 1]} : vector<2x128xf32> to vector<1x128xf32>
    %180 = vector.extract_strided_slice %87 {offsets = [0, 0], sizes = [1, 128], strides = [1, 1]} : vector<2x128xf32> to vector<1x128xf32>
    %181 = vector.extract_strided_slice %105 {offsets = [0, 0], sizes = [1, 128], strides = [1, 1]} : vector<2x128xf32> to vector<1x128xf32>
    %182 = vector.extract_strided_slice %123 {offsets = [0, 0], sizes = [1, 128], strides = [1, 1]} : vector<2x128xf32> to vector<1x128xf32>
    %183 = vector.extract_strided_slice %141 {offsets = [0, 0], sizes = [1, 128], strides = [1, 1]} : vector<2x128xf32> to vector<1x128xf32>
    %184 = vector.extract_strided_slice %159 {offsets = [0, 0], sizes = [1, 128], strides = [1, 1]} : vector<2x128xf32> to vector<1x128xf32>
    %185 = vector.extract_strided_slice %177 {offsets = [0, 0], sizes = [1, 128], strides = [1, 1]} : vector<2x128xf32> to vector<1x128xf32>
    %186 = vector.extract_strided_slice %51 {offsets = [1, 0], sizes = [1, 128], strides = [1, 1]} : vector<2x128xf32> to vector<1x128xf32>
    %187 = vector.extract_strided_slice %69 {offsets = [1, 0], sizes = [1, 128], strides = [1, 1]} : vector<2x128xf32> to vector<1x128xf32>
    %188 = vector.extract_strided_slice %87 {offsets = [1, 0], sizes = [1, 128], strides = [1, 1]} : vector<2x128xf32> to vector<1x128xf32>
    %189 = vector.extract_strided_slice %105 {offsets = [1, 0], sizes = [1, 128], strides = [1, 1]} : vector<2x128xf32> to vector<1x128xf32>
    %190 = vector.extract_strided_slice %123 {offsets = [1, 0], sizes = [1, 128], strides = [1, 1]} : vector<2x128xf32> to vector<1x128xf32>
    %191 = vector.extract_strided_slice %141 {offsets = [1, 0], sizes = [1, 128], strides = [1, 1]} : vector<2x128xf32> to vector<1x128xf32>
    %192 = vector.extract_strided_slice %159 {offsets = [1, 0], sizes = [1, 128], strides = [1, 1]} : vector<2x128xf32> to vector<1x128xf32>
    %193 = vector.extract_strided_slice %177 {offsets = [1, 0], sizes = [1, 128], strides = [1, 1]} : vector<2x128xf32> to vector<1x128xf32>
    %194 = tpu.concatenate %178, %179, %180, %181, %182, %183, %184, %185, %186, %187, %188, %189, %190, %191, %192, %193 in 0 : vector<1x128xf32>, vector<1x128xf32>, vector<1x128xf32>, vector<1x128xf32>, vector<1x128xf32>, vector<1x128xf32>, vector<1x128xf32>, vector<1x128xf32>, vector<1x128xf32>, vector<1x128xf32>, vector<1x128xf32>, vector<1x128xf32>, vector<1x128xf32>, vector<1x128xf32>, vector<1x128xf32>, vector<1x128xf32> -> vector<16x128xf32>
    %195 = arith.truncf %194 : vector<16x128xf32> to vector<16x128xbf16>
    %c0_33 = arith.constant 0 : index
    %c0_34 = arith.constant 0 : index
    %196 = vector.load %arg5[%c0_33, %c0_34] : memref<128x128xbf16, #tpu.memory_space<vmem>>, vector<128x128xbf16>
    %cst_35 = arith.constant dense<0.000000e+00> : vector<16x128xf32>
    %197 = tpu.matmul %195, %196, %cst_35 {dimension_numbers = #tpu.dot_dimension_numbers<[1], [0], [0], [1], [0, 0, 1, 1], [], []>} : vector<16x128xbf16>, vector<128x128xbf16>, vector<16x128xf32> -> vector<16x128xf32>
    %c0_36 = arith.constant 0 : index
    %c0_37 = arith.constant 0 : index
    %198 = vector.load %arg6[%c0_36, %c0_37] : memref<1x128xf32, #tpu.memory_space<vmem>>, vector<1x128xf32>
    %199 = vector.broadcast %198 : vector<1x128xf32> to vector<16x128xf32>
    %200 = arith.addf %197, %199 : vector<16x128xf32>
    %c0_38 = arith.constant 0 : index
    %c0_39 = arith.constant 0 : index
    %201 = vector.load %arg7[%c0_38, %c0_39] : memref<16x128xf32, #tpu.memory_space<vmem>>, vector<16x128xf32>
    tpu.vector_store %arg7[%c0_38, %c0_39], %200 {strides = array<i32>} : memref<16x128xf32, #tpu.memory_space<vmem>>, vector<16x128xf32>,
    return
  }
  func.func @transform_0(%arg0: i32) -> (i32, i32) {
    %c0_i32 = arith.constant 0 : i32
    %c0_i32_0 = arith.constant 0 : i32
    %c0_i32_1 = arith.constant 0 : i32
    return %c0_i32, %c0_i32_0 : i32, i32
  }
  func.func @transform_1(%arg0: i32) -> (i32, i32) {
    %c0_i32 = arith.constant 0 : i32
    %c0_i32_0 = arith.constant 0 : i32
    %c0_i32_1 = arith.constant 0 : i32
    return %c0_i32, %c0_i32_0 : i32, i32
  }
  func.func @transform_2(%arg0: i32) -> (i32, i32) {
    %c0_i32 = arith.constant 0 : i32
    %c0_i32_0 = arith.constant 0 : i32
    %c0_i32_1 = arith.constant 0 : i32
    return %c0_i32, %c0_i32_0 : i32, i32
  }
  func.func @transform_3(%arg0: i32) -> (i32, i32) {
    %c0_i32 = arith.constant 0 : i32
    %c0_i32_0 = arith.constant 0 : i32
    %c0_i32_1 = arith.constant 0 : i32
    return %c0_i32, %c0_i32_0 : i32, i32
  }
  func.func @transform_4(%arg0: i32) -> (i32, i32) {
    %c0_i32 = arith.constant 0 : i32
    %c0_i32_0 = arith.constant 0 : i32
    %c0_i32_1 = arith.constant 0 : i32
    return %c0_i32, %c0_i32_0 : i32, i32
  }
  func.func @transform_5(%arg0: i32) -> (i32, i32) {
    %c0_i32 = arith.constant 0 : i32
    %c0_i32_0 = arith.constant 0 : i32
    %c0_i32_1 = arith.constant 0 : i32
    return %c0_i32, %c0_i32_0 : i32, i32
  }
  func.func @transform_6(%arg0: i32) -> (i32, i32) {
    %c0_i32 = arith.constant 0 : i32
    %c0_i32_0 = arith.constant 0 : i32
    %c0_i32_1 = arith.constant 0 : i32
    return %c0_i32, %c0_i32_0 : i32, i32
  }
}

</mosaic_0001>

<llo_original>
// kernel: decoder_forward.1
$region0: #{decoder_forward.1}
  #allocation0 [shape = 'u32[]', space=smem, size = 0x4, offset = 0x4, fixed_abs, tag = 'smem constant byte address 0x4 - core index']
  #allocation1 [shape = 'u32[144,128]{1,0:T(1,128)}', space=vmem, size = 0x12000, scoped, tag = 'internal scratch']
  %s0 = inlined_call_operand.hbm [shape: f32[16,32], index: 0, kind: input, shape index: {}]
  %s1 = inlined_call_operand.hbm [shape: bf16[32,512], index: 1, kind: input, shape index: {}]
  %s2 = inlined_call_operand.hbm [shape: bf16[128,512], index: 2, kind: input, shape index: {}]
  %s3 = inlined_call_operand.vmem [shape: f32[1,512], index: 3, kind: input, shape index: {}]
  %s4 = inlined_call_operand.hbm [shape: bf16[128,128], index: 4, kind: input, shape index: {}]
  %s5 = inlined_call_operand.vmem [shape: f32[1,128], index: 5, kind: input, shape index: {}]
  %s6 = inlined_call_operand.hbm [shape: f32[16,128], index: 6, kind: output, shape index: {}]
  %s7 = sld [smem:[#allocation0]]
  $region50: #{decoder_forward.1} parent=0
    _
  %s9 = ssub.s32 1, %s7
  %s10 = scalar_select 0, %s9, %s7
  $region1: #{decoder_forward.1} parent=0
    #allocation2 [shape = 'u8[8192]{0}', space=vmem, size = 0x2000, scoped, tag = 'input window, operand 0, single buffered']
    #allocation3 [shape = 's32[1]{0}', space=sflag, size = 0x4, scoped, tag = 'scoped memory for decoder_forward.1']
    #allocation4 [shape = 's32[1]{0}', space=sflag, size = 0x4, scoped, tag = 'scoped memory for decoder_forward.1']
    #allocation5 [shape = 'u8[32768]{0}', space=vmem, size = 0x8000, scoped, tag = 'input window, operand 1, single buffered']
    #allocation6 [shape = 's32[1]{0}', space=sflag, size = 0x4, scoped, tag = 'scoped memory for decoder_forward.1']
    #allocation7 [shape = 'u8[131072]{0}', space=vmem, size = 0x20000, scoped, tag = 'input window, operand 2, single buffered']
    #allocation8 [shape = 'u8[32768]{0}', space=vmem, size = 0x8000, scoped, tag = 'input window, operand 4, single buffered']
    #allocation9 [shape = 's32[1]{0}', space=sflag, size = 0x4, scoped, tag = 'scoped memory for decoder_forward.1']
    #allocation10 [shape = 'u8[8192]{0}', space=vmem, size = 0x2000, scoped, tag = 'output window, operand 0, single buffered']
    %11 = vsyncpa [#allocation3], 0
    %12 = vsyncpa [#allocation6], 0
    %13 = vsyncpa [#allocation9], 0
    %14 = vsyncpa [#allocation4], 0
    // Predicated region
    $region2: #{decoder_forward.1} parent=1 // pred_check
      _
    $region3: #{decoder_forward.1} parent=1 // pred_check_branch
      %16 = sbr.rel (0) target = $region5
    $region4: #{decoder_forward.1} parent=1 // pred_region
      %s18 = ssub.s32 256, 256
      %19 = vsyncadd [#allocation3], %s18
      %s20 = sshll.u32 [#allocation2], 4
      %s21 = int_to_ptr.vmem [resolvable:$true] %s20
      %26 = dma.hbm_to_vmem [thread:$0]  %s0, 256, %s21, [#allocation3], 128, 128, 8
    $region5: #{decoder_forward.1} parent=1 // pred_fallthru
      _
    // Predicated region
    $region6: #{decoder_forward.1} parent=1 // pred_check
      _
    $region7: #{decoder_forward.1} parent=1 // pred_check_branch
      %28 = sbr.rel (0) target = $region9
    $region8: #{decoder_forward.1} parent=1 // pred_region
      %s30 = ssub.s32 1024, 1024
      %31 = vsyncadd [#allocation6], %s30
      %s32 = sshll.u32 [#allocation5], 4
      %s33 = int_to_ptr.vmem [resolvable:$true] %s32
      %38 = dma.hbm_to_vmem [thread:$0]  %s1, 1024, %s33, [#allocation6], 256, 256, 16
    $region9: #{decoder_forward.1} parent=1 // pred_fallthru
      _
    // Predicated region
    $region10: #{decoder_forward.1} parent=1 // pred_check
      _
    $region11: #{decoder_forward.1} parent=1 // pred_check_branch
      %40 = sbr.rel (0) target = $region13
    $region12: #{decoder_forward.1} parent=1 // pred_region
      %s42 = ssub.s32 4096, 4096
      %43 = vsyncadd [#allocation6], %s42
      %s44 = sshll.u32 [#allocation7], 4
      %s45 = int_to_ptr.vmem [resolvable:$true] %s44
      %50 = dma.hbm_to_vmem [thread:$0]  %s2, 4096, %s45, [#allocation6], 256, 256, 16
    $region13: #{decoder_forward.1} parent=1 // pred_fallthru
      _
    // Predicated region
    $region14: #{decoder_forward.1} parent=1 // pred_check
      _
    $region15: #{decoder_forward.1} parent=1 // pred_check_branch
      %52 = sbr.rel (0) target = $region17
    $region16: #{decoder_forward.1} parent=1 // pred_region
      _
    $region17: #{decoder_forward.1} parent=1 // pred_fallthru
      _
    // Predicated region
    $region18: #{decoder_forward.1} parent=1 // pred_check
      _
    $region19: #{decoder_forward.1} parent=1 // pred_check_branch
      %54 = sbr.rel (0) target = $region21
    $region20: #{decoder_forward.1} parent=1 // pred_region
      %s56 = ssub.s32 1024, 1024
      %57 = vsyncadd [#allocation9], %s56
      %s58 = sshll.u32 [#allocation8], 4
      %s59 = int_to_ptr.vmem [resolvable:$true] %s58
      %64 = dma.hbm_to_vmem [thread:$0]  %s4, 1024, %s59, [#allocation9], 64, 64, 4
    $region21: #{decoder_forward.1} parent=1 // pred_fallthru
      _
    // Predicated region
    $region22: #{decoder_forward.1} parent=1 // pred_check
      _
    $region23: #{decoder_forward.1} parent=1 // pred_check_branch
      %66 = sbr.rel (0) target = $region25
    $region24: #{decoder_forward.1} parent=1 // pred_region
      _
    $region25: #{decoder_forward.1} parent=1 // pred_fallthru
      _
    // Predicated region
    $region26: #{decoder_forward.1} parent=1 // pred_check
      _
    $region27: #{decoder_forward.1} parent=1 // pred_check_branch
      %68 = sbr.rel (0) target = $region29
    $region28: #{decoder_forward.1} parent=1 // pred_region
      %69 = dma.done [#allocation3], 256
    $region29: #{decoder_forward.1} parent=1 // pred_fallthru
      _
    // Predicated region
    $region30: #{decoder_forward.1} parent=1 // pred_check
      _
    $region31: #{decoder_forward.1} parent=1 // pred_check_branch
      %71 = sbr.rel (0) target = $region33
    $region32: #{decoder_forward.1} parent=1 // pred_region
      %72 = dma.done [#allocation6], 1024
    $region33: #{decoder_forward.1} parent=1 // pred_fallthru
      _
    // Predicated region
    $region34: #{decoder_forward.1} parent=1 // pred_check
      _
    $region35: #{decoder_forward.1} parent=1 // pred_check_branch
      %74 = sbr.rel (0) target = $region37
    $region36: #{decoder_forward.1} parent=1 // pred_region
      %75 = dma.done [#allocation6], 4096
    $region37: #{decoder_forward.1} parent=1 // pred_fallthru
      _
    // Predicated region
    $region38: #{decoder_forward.1} parent=1 // pred_check
      _
    $region39: #{decoder_forward.1} parent=1 // pred_check_branch
      %77 = sbr.rel (0) target = $region41
    $region40: #{decoder_forward.1} parent=1 // pred_region
      %78 = dma.done [#allocation9], 1024
    $region41: #{decoder_forward.1} parent=1 // pred_fallthru
      _
    %v80 = vld [vmem:[#allocation2] sm:$0xff]
    %v81 = vld [vmem:[#allocation2 + $0x8] sm:$0xff]
    %v82 = vpack.c.bf16 %v81, %v80
    %v83 = vld [vmem:[#allocation5] sm:$0xff]
    %v84 = vld [vmem:[#allocation5 + $0x8] sm:$0xff]
    %v85 = vld [vmem:[#allocation5 + $0x10] sm:$0xff]
    %v86 = vld [vmem:[#allocation5 + $0x18] sm:$0xff]
    %v87 = vld [vmem:[#allocation5 + $0x20] sm:$0xff]
    %v88 = vld [vmem:[#allocation5 + $0x28] sm:$0xff]
    %v89 = vld [vmem:[#allocation5 + $0x30] sm:$0xff]
    %v90 = vld [vmem:[#allocation5 + $0x38] sm:$0xff]
    %v91 = vld [vmem:[%s3] sm:$0xf]
    %v93 = vlaneseq
    %v94 = vshrl.u32 %v93, 7
    %v95 = vsub.s32 0, %v94
    %v96 = vrot.slane %v91, %v95
    %v97 = vlaneseq
    %v98 = vshrl.u32 %v97, 7
    %v99 = vsub.s32 1, %v98
    %v100 = vrot.slane %v91, %v99
    %v101 = vlaneseq
    %v102 = vshrl.u32 %v101, 7
    %v103 = vsub.s32 2, %v102
    %v104 = vrot.slane %v91, %v103
    %v105 = vlaneseq
    %v106 = vshrl.u32 %v105, 7
    %v107 = vsub.s32 3, %v106
    %v108 = vrot.slane %v91, %v107
    %v121 = vunpack.c.l.b16 %v83
    %v122 = vunpack.c.h.b16 %v83
    %v123 = vunpack.c.l.b16 %v84
    %v124 = vunpack.c.h.b16 %v84
    %v125 = vunpack.c.l.b16 %v85
    %v126 = vunpack.c.h.b16 %v85
    %v127 = vunpack.c.l.b16 %v86
    %v128 = vunpack.c.h.b16 %v86
    %v129 = vunpack.c.l.b16 %v87
    %v130 = vunpack.c.h.b16 %v87
    %v131 = vunpack.c.l.b16 %v88
    %v132 = vunpack.c.h.b16 %v88
    %v133 = vunpack.c.l.b16 %v89
    %v134 = vunpack.c.h.b16 %v89
    %v135 = vunpack.c.l.b16 %v90
    %v136 = vunpack.c.h.b16 %v90
    %v137 = vpack.c.b16 %v125, %v121
    %v138 = vpack.c.b16 %v126, %v122
    %v139 = vpack.c.b16 %v127, %v123
    %v140 = vpack.c.b16 %v128, %v124
    %v141 = vpack.c.b16 %v133, %v129
    %v142 = vpack.c.b16 %v134, %v130
    %v143 = vpack.c.b16 %v135, %v131
    %v144 = vpack.c.b16 %v136, %v132
    %vm153 = vcmask 261120
    %v155 = vsel %vm153, %v82, 0
    %157 = vmatprep.subr.bf16.mxu0 0
    %158 = vmatpush1.bf16.msra.mxu0 0
    %159 = vmatprep.subr.bf16.mxu0 0
    %160 = vmatpush1.bf16.msra.mxu0 0
    %161 = vmatprep.subr.bf16.mxu0 0
    %162 = vmatpush1.bf16.msra.mxu0 0
    %163 = vmatprep.subr.bf16.mxu0 0
    %164 = vmatpush1.bf16.msra.mxu0 0
    %165 = vmatprep.subr.bf16.mxu0 0
    %166 = vmatpush1.bf16.msra.mxu0 0
    %167 = vmatprep.subr.bf16.mxu0 0
    %168 = vmatpush1.bf16.msra.mxu0 0
    %169 = vmatprep.subr.bf16.mxu0 %v142
    %170 = vmatpush1.bf16.msra.mxu0 %v141
    %171 = vmatprep.subr.bf16.mxu0 %v138
    %172 = vmatpush1.bf16.msra.mxu0 %v137
    %173 = vmatprep.subr.bf16.mxu0 0
    %174 = vmatpush2.bf16.msra.mxu0 0
    %175 = vmatprep.subr.bf16.mxu0 0
    %176 = vmatpush2.bf16.msra.mxu0 0
    %177 = vmatprep.subr.bf16.mxu0 0
    %178 = vmatpush2.bf16.msra.mxu0 0
    %179 = vmatprep.subr.bf16.mxu0 0
    %180 = vmatpush2.bf16.msra.mxu0 0
    %181 = vmatprep.subr.bf16.mxu0 0
    %182 = vmatpush2.bf16.msra.mxu0 0
    %183 = vmatprep.subr.bf16.mxu0 0
    %184 = vmatpush2.bf16.msra.mxu0 0
    %185 = vmatprep.subr.bf16.mxu0 0
    %186 = vmatpush2.bf16.msra.mxu0 0
    %187 = vmatprep.subr.bf16.mxu0 0
    %188 = vmatpush2.bf16.msra.mxu0 0
    %189 = vmatprep.mubr.bf16.mxu0 0
    %190 = vmatmul.mubr.bf16.gmra.mxu0 %v155
    %v191 = vpop.f32.mrf.mxu0
    %v192 = vadd.f32 %v96, %v191
    %v193 = vpop.f32.mrf.mxu0
    %v194 = vadd.f32 %v100, %v193
    %v195 = vpop.f32.mrf.mxu0
    %v196 = vadd.f32 %v96, %v195
    %v197 = vpop.f32.mrf.mxu0
    %v198 = vadd.f32 %v100, %v197
    %199 = vdwg.mxu0
    %200 = vmatprep.subr.bf16.mxu0 0
    %201 = vmatpush1.bf16.msra.mxu0 0
    %202 = vmatprep.subr.bf16.mxu0 0
    %203 = vmatpush1.bf16.msra.mxu0 0
    %204 = vmatprep.subr.bf16.mxu0 0
    %205 = vmatpush1.bf16.msra.mxu0 0
    %206 = vmatprep.subr.bf16.mxu0 0
    %207 = vmatpush1.bf16.msra.mxu0 0
    %208 = vmatprep.subr.bf16.mxu0 0
    %209 = vmatpush1.bf16.msra.mxu0 0
    %210 = vmatprep.subr.bf16.mxu0 0
    %211 = vmatpush1.bf16.msra.mxu0 0
    %212 = vmatprep.subr.bf16.mxu0 %v144
    %213 = vmatpush1.bf16.msra.mxu0 %v143
    %214 = vmatprep.subr.bf16.mxu0 %v140
    %215 = vmatpush1.bf16.msra.mxu0 %v139
    %216 = vmatprep.subr.bf16.mxu0 0
    %217 = vmatpush2.bf16.msra.mxu0 0
    %218 = vmatprep.subr.bf16.mxu0 0
    %219 = vmatpush2.bf16.msra.mxu0 0
    %220 = vmatprep.subr.bf16.mxu0 0
    %221 = vmatpush2.bf16.msra.mxu0 0
    %222 = vmatprep.subr.bf16.mxu0 0
    %223 = vmatpush2.bf16.msra.mxu0 0
    %224 = vmatprep.subr.bf16.mxu0 0
    %225 = vmatpush2.bf16.msra.mxu0 0
    %226 = vmatprep.subr.bf16.mxu0 0
    %227 = vmatpush2.bf16.msra.mxu0 0
    %228 = vmatprep.subr.bf16.mxu0 0
    %229 = vmatpush2.bf16.msra.mxu0 0
    %230 = vmatprep.subr.bf16.mxu0 0
    %231 = vmatpush2.bf16.msra.mxu0 0
    %232 = vmatprep.mubr.bf16.mxu0 0
    %233 = vmatmul.mubr.bf16.gmra.mxu0 %v155
    %v234 = vpop.f32.mrf.mxu0
    %v235 = vadd.f32 %v104, %v234
    %v236 = vpop.f32.mrf.mxu0
    %v237 = vadd.f32 %v108, %v236
    %v238 = vpop.f32.mrf.mxu0
    %v239 = vadd.f32 %v104, %v238
    %v240 = vpop.f32.mrf.mxu0
    %v241 = vadd.f32 %v108, %v240
    %242 = vdwg.mxu0
    %v247 = vrot.slane %v196, 7
    %v248 = vrot.slane %v198, 7
    %v249 = vrot.slane %v239, 7
    %v250 = vrot.slane %v241, 7
    %vm255 = vcmask 1040384
    %v256 = vsel %vm255, %v192, %v247
    %v257 = vsel %vm255, %v194, %v248
    %v258 = vsel %vm255, %v235, %v249
    %v259 = vsel %vm255, %v237, %v250
    %v264 = vrot.slane %v192, 1
    %v265 = vrot.slane %v194, 1
    %v266 = vrot.slane %v235, 1
    %v267 = vrot.slane %v237, 1
    %v272 = vsel %vm255, %v264, %v196
    %v273 = vsel %vm255, %v265, %v198
    %v274 = vsel %vm255, %v266, %v239
    %v275 = vsel %vm255, %v267, %v241
    %v276 = vrot.slane %v192, 2
    %v277 = vrot.slane %v194, 2
    %v278 = vrot.slane %v235, 2
    %v279 = vrot.slane %v237, 2
    %v284 = vrot.slane %v196, 1
    %v285 = vrot.slane %v198, 1
    %v286 = vrot.slane %v239, 1
    %v287 = vrot.slane %v241, 1
    %v292 = vsel %vm255, %v276, %v284
    %v293 = vsel %vm255, %v277, %v285
    %v294 = vsel %vm255, %v278, %v286
    %v295 = vsel %vm255, %v279, %v287
    %v296 = vrot.slane %v192, 3
    %v297 = vrot.slane %v194, 3
    %v298 = vrot.slane %v235, 3
    %v299 = vrot.slane %v237, 3
    %v304 = vrot.slane %v196, 2
    %v305 = vrot.slane %v198, 2
    %v306 = vrot.slane %v239, 2
    %v307 = vrot.slane %v241, 2
    %v312 = vsel %vm255, %v296, %v304
    %v313 = vsel %vm255, %v297, %v305
    %v314 = vsel %vm255, %v298, %v306
    %v315 = vsel %vm255, %v299, %v307
    %v316 = vrot.slane %v192, 4
    %v317 = vrot.slane %v194, 4
    %v318 = vrot.slane %v235, 4
    %v319 = vrot.slane %v237, 4
    %v324 = vrot.slane %v196, 3
    %v325 = vrot.slane %v198, 3
    %v326 = vrot.slane %v239, 3
    %v327 = vrot.slane %v241, 3
    %v332 = vsel %vm255, %v316, %v324
    %v333 = vsel %vm255, %v317, %v325
    %v334 = vsel %vm255, %v318, %v326
    %v335 = vsel %vm255, %v319, %v327
    %v336 = vrot.slane %v192, 5
    %v337 = vrot.slane %v194, 5
    %v338 = vrot.slane %v235, 5
    %v339 = vrot.slane %v237, 5
    %v344 = vrot.slane %v196, 4
    %v345 = vrot.slane %v198, 4
    %v346 = vrot.slane %v239, 4
    %v347 = vrot.slane %v241, 4
    %v352 = vsel %vm255, %v336, %v344
    %v353 = vsel %vm255, %v337, %v345
    %v354 = vsel %vm255, %v338, %v346
    %v355 = vsel %vm255, %v339, %v347
    %v356 = vrot.slane %v192, 6
    %v357 = vrot.slane %v194, 6
    %v358 = vrot.slane %v235, 6
    %v359 = vrot.slane %v237, 6
    %v364 = vrot.slane %v196, 5
    %v365 = vrot.slane %v198, 5
    %v366 = vrot.slane %v239, 5
    %v367 = vrot.slane %v241, 5
    %v372 = vsel %vm255, %v356, %v364
    %v373 = vsel %vm255, %v357, %v365
    %v374 = vsel %vm255, %v358, %v366
    %v375 = vsel %vm255, %v359, %v367
    %v376 = vrot.slane %v192, 7
    %v377 = vrot.slane %v194, 7
    %v378 = vrot.slane %v235, 7
    %v379 = vrot.slane %v237, 7
    %v384 = vrot.slane %v196, 6
    %v385 = vrot.slane %v198, 6
    %v386 = vrot.slane %v239, 6
    %v387 = vrot.slane %v241, 6
    %v392 = vsel %vm255, %v376, %v384
    %v393 = vsel %vm255, %v377, %v385
    %v394 = vsel %vm255, %v378, %v386
    %v395 = vsel %vm255, %v379, %v387
    %v396 = vld [vmem:[#allocation7] sm:$0xff]
    %v397 = vld [vmem:[#allocation7 + $0x8] sm:$0xff]
    %v398 = vld [vmem:[#allocation7 + $0x10] sm:$0xff]
    %v399 = vld [vmem:[#allocation7 + $0x18] sm:$0xff]
    %v400 = vld [vmem:[#allocation7 + $0x20] sm:$0xff]
    %v401 = vld [vmem:[#allocation7 + $0x28] sm:$0xff]
    %v402 = vld [vmem:[#allocation7 + $0x30] sm:$0xff]
    %v403 = vld [vmem:[#allocation7 + $0x38] sm:$0xff]
    %v404 = vld [vmem:[#allocation7 + $0x40] sm:$0xff]
    %v405 = vld [vmem:[#allocation7 + $0x48] sm:$0xff]
    %v406 = vld [vmem:[#allocation7 + $0x50] sm:$0xff]
    %v407 = vld [vmem:[#allocation7 + $0x58] sm:$0xff]
    %v408 = vld [vmem:[#allocation7 + $0x60] sm:$0xff]
    %v409 = vld [vmem:[#allocation7 + $0x68] sm:$0xff]
    %v410 = vld [vmem:[#allocation7 + $0x70] sm:$0xff]
    %v411 = vld [vmem:[#allocation7 + $0x78] sm:$0xff]
    %v412 = vld [vmem:[#allocation7 + $0x80] sm:$0xff]
    %v413 = vld [vmem:[#allocation7 + $0x88] sm:$0xff]
    %v414 = vld [vmem:[#allocation7 + $0x90] sm:$0xff]
    %v415 = vld [vmem:[#allocation7 + $0x98] sm:$0xff]
    %v416 = vld [vmem:[#allocation7 + $0xa0] sm:$0xff]
    %v417 = vld [vmem:[#allocation7 + $0xa8] sm:$0xff]
    %v418 = vld [vmem:[#allocation7 + $0xb0] sm:$0xff]
    %v419 = vld [vmem:[#allocation7 + $0xb8] sm:$0xff]
    %v420 = vld [vmem:[#allocation7 + $0xc0] sm:$0xff]
    %v421 = vld [vmem:[#allocation7 + $0xc8] sm:$0xff]
    %v422 = vld [vmem:[#allocation7 + $0xd0] sm:$0xff]
    %v423 = vld [vmem:[#allocation7 + $0xd8] sm:$0xff]
    %v424 = vld [vmem:[#allocation7 + $0xe0] sm:$0xff]
    %v425 = vld [vmem:[#allocation7 + $0xe8] sm:$0xff]
    %v426 = vld [vmem:[#allocation7 + $0xf0] sm:$0xff]
    %v427 = vld [vmem:[#allocation7 + $0xf8] sm:$0xff]
    %v460 = vunpack.c.l.b16 %v396
    %v461 = vunpack.c.h.b16 %v396
    %v462 = vunpack.c.l.b16 %v397
    %v463 = vunpack.c.h.b16 %v397
    %v464 = vunpack.c.l.b16 %v398
    %v465 = vunpack.c.h.b16 %v398
    %v466 = vunpack.c.l.b16 %v399
    %v467 = vunpack.c.h.b16 %v399
    %v468 = vunpack.c.l.b16 %v400
    %v469 = vunpack.c.h.b16 %v400
    %v470 = vunpack.c.l.b16 %v401
    %v471 = vunpack.c.h.b16 %v401
    %v472 = vunpack.c.l.b16 %v402
    %v473 = vunpack.c.h.b16 %v402
    %v474 = vunpack.c.l.b16 %v403
    %v475 = vunpack.c.h.b16 %v403
    %v476 = vunpack.c.l.b16 %v404
    %v477 = vunpack.c.h.b16 %v404
    %v478 = vunpack.c.l.b16 %v405
    %v479 = vunpack.c.h.b16 %v405
    %v480 = vunpack.c.l.b16 %v406
    %v481 = vunpack.c.h.b16 %v406
    %v482 = vunpack.c.l.b16 %v407
    %v483 = vunpack.c.h.b16 %v407
    %v484 = vunpack.c.l.b16 %v408
    %v485 = vunpack.c.h.b16 %v408
    %v486 = vunpack.c.l.b16 %v409
    %v487 = vunpack.c.h.b16 %v409
    %v488 = vunpack.c.l.b16 %v410
    %v489 = vunpack.c.h.b16 %v410
    %v490 = vunpack.c.l.b16 %v411
    %v491 = vunpack.c.h.b16 %v411
    %v492 = vunpack.c.l.b16 %v412
    %v493 = vunpack.c.h.b16 %v412
    %v494 = vunpack.c.l.b16 %v413
    %v495 = vunpack.c.h.b16 %v413
    %v496 = vunpack.c.l.b16 %v414
    %v497 = vunpack.c.h.b16 %v414
    %v498 = vunpack.c.l.b16 %v415
    %v499 = vunpack.c.h.b16 %v415
    %v500 = vunpack.c.l.b16 %v416
    %v501 = vunpack.c.h.b16 %v416
    %v502 = vunpack.c.l.b16 %v417
    %v503 = vunpack.c.h.b16 %v417
    %v504 = vunpack.c.l.b16 %v418
    %v505 = vunpack.c.h.b16 %v418
    %v506 = vunpack.c.l.b16 %v419
    %v507 = vunpack.c.h.b16 %v419
    %v508 = vunpack.c.l.b16 %v420
    %v509 = vunpack.c.h.b16 %v420
    %v510 = vunpack.c.l.b16 %v421
    %v511 = vunpack.c.h.b16 %v421
    %v512 = vunpack.c.l.b16 %v422
    %v513 = vunpack.c.h.b16 %v422
    %v514 = vunpack.c.l.b16 %v423
    %v515 = vunpack.c.h.b16 %v423
    %v516 = vunpack.c.l.b16 %v424
    %v517 = vunpack.c.h.b16 %v424
    %v518 = vunpack.c.l.b16 %v425
    %v519 = vunpack.c.h.b16 %v425
    %v520 = vunpack.c.l.b16 %v426
    %v521 = vunpack.c.h.b16 %v426
    %v522 = vunpack.c.l.b16 %v427
    %v523 = vunpack.c.h.b16 %v427
    %v524 = vpack.c.b16 %v464, %v460
    %v525 = vpack.c.b16 %v465, %v461
    %v526 = vpack.c.b16 %v466, %v462
    %v527 = vpack.c.b16 %v467, %v463
    %v528 = vpack.c.b16 %v472, %v468
    %v529 = vpack.c.b16 %v473, %v469
    %v530 = vpack.c.b16 %v474, %v470
    %v531 = vpack.c.b16 %v475, %v471
    %v532 = vpack.c.b16 %v480, %v476
    %v533 = vpack.c.b16 %v481, %v477
    %v534 = vpack.c.b16 %v482, %v478
    %v535 = vpack.c.b16 %v483, %v479
    %v536 = vpack.c.b16 %v488, %v484
    %v537 = vpack.c.b16 %v489, %v485
    %v538 = vpack.c.b16 %v490, %v486
    %v539 = vpack.c.b16 %v491, %v487
    %v540 = vpack.c.b16 %v496, %v492
    %v541 = vpack.c.b16 %v497, %v493
    %v542 = vpack.c.b16 %v498, %v494
    %v543 = vpack.c.b16 %v499, %v495
    %v544 = vpack.c.b16 %v504, %v500
    %v545 = vpack.c.b16 %v505, %v501
    %v546 = vpack.c.b16 %v506, %v502
    %v547 = vpack.c.b16 %v507, %v503
    %v548 = vpack.c.b16 %v512, %v508
    %v549 = vpack.c.b16 %v513, %v509
    %v550 = vpack.c.b16 %v514, %v510
    %v551 = vpack.c.b16 %v515, %v511
    %v552 = vpack.c.b16 %v520, %v516
    %v553 = vpack.c.b16 %v521, %v517
    %v554 = vpack.c.b16 %v522, %v518
    %v555 = vpack.c.b16 %v523, %v519
    %588 = vmatprep.subr.bf16.mxu0 %v553
    %589 = vmatpush1.bf16.msra.mxu0 %v552
    %590 = vmatprep.subr.bf16.mxu0 %v549
    %591 = vmatpush1.bf16.msra.mxu0 %v548
    %592 = vmatprep.subr.bf16.mxu0 %v545
    %593 = vmatpush1.bf16.msra.mxu0 %v544
    %594 = vmatprep.subr.bf16.mxu0 %v541
    %595 = vmatpush1.bf16.msra.mxu0 %v540
    %596 = vmatprep.subr.bf16.mxu0 %v537
    %597 = vmatpush1.bf16.msra.mxu0 %v536
    %598 = vmatprep.subr.bf16.mxu0 %v533
    %599 = vmatpush1.bf16.msra.mxu0 %v532
    %600 = vmatprep.subr.bf16.mxu0 %v529
    %601 = vmatpush1.bf16.msra.mxu0 %v528
    %602 = vmatprep.subr.bf16.mxu0 %v525
    %603 = vmatpush1.bf16.msra.mxu0 %v524
    %604 = vmatprep.subr.bf16.mxu0 0
    %605 = vmatpush2.bf16.msra.mxu0 0
    %606 = vmatprep.subr.bf16.mxu0 0
    %607 = vmatpush2.bf16.msra.mxu0 0
    %608 = vmatprep.subr.bf16.mxu0 0
    %609 = vmatpush2.bf16.msra.mxu0 0
    %610 = vmatprep.subr.bf16.mxu0 0
    %611 = vmatpush2.bf16.msra.mxu0 0
    %612 = vmatprep.subr.bf16.mxu0 0
    %613 = vmatpush2.bf16.msra.mxu0 0
    %614 = vmatprep.subr.bf16.mxu0 0
    %615 = vmatpush2.bf16.msra.mxu0 0
    %616 = vmatprep.subr.bf16.mxu0 0
    %617 = vmatpush2.bf16.msra.mxu0 0
    %618 = vmatprep.subr.bf16.mxu0 0
    %619 = vmatpush2.bf16.msra.mxu0 0
    %620 = vmatprep.mubr.bf16.mxu0 0
    %621 = vmatmul.mubr.bf16.gmra.mxu0 0
    %v622 = vpop.f32.mrf.mxu0
    %v623 = vadd.f32 0.0, %v622
    %v624 = vpop.f32.mrf.mxu0
    %v625 = vadd.f32 0.0, %v624
    %v626 = vpop.f32.mrf.mxu0
    %v627 = vpop.f32.mrf.mxu0
    %628 = vdwg.mxu0
    %629 = vmatprep.subr.bf16.mxu0 %v555
    %630 = vmatpush1.bf16.msra.mxu0 %v554
    %631 = vmatprep.subr.bf16.mxu0 %v551
    %632 = vmatpush1.bf16.msra.mxu0 %v550
    %633 = vmatprep.subr.bf16.mxu0 %v547
    %634 = vmatpush1.bf16.msra.mxu0 %v546
    %635 = vmatprep.subr.bf16.mxu0 %v543
    %636 = vmatpush1.bf16.msra.mxu0 %v542
    %637 = vmatprep.subr.bf16.mxu0 %v539
    %638 = vmatpush1.bf16.msra.mxu0 %v538
    %639 = vmatprep.subr.bf16.mxu0 %v535
    %640 = vmatpush1.bf16.msra.mxu0 %v534
    %641 = vmatprep.subr.bf16.mxu0 %v531
    %642 = vmatpush1.bf16.msra.mxu0 %v530
    %643 = vmatprep.subr.bf16.mxu0 %v527
    %644 = vmatpush1.bf16.msra.mxu0 %v526
    %645 = vmatprep.subr.bf16.mxu0 0
    %646 = vmatpush2.bf16.msra.mxu0 0
    %647 = vmatprep.subr.bf16.mxu0 0
    %648 = vmatpush2.bf16.msra.mxu0 0
    %649 = vmatprep.subr.bf16.mxu0 0
    %650 = vmatpush2.bf16.msra.mxu0 0
    %651 = vmatprep.subr.bf16.mxu0 0
    %652 = vmatpush2.bf16.msra.mxu0 0
    %653 = vmatprep.subr.bf16.mxu0 0
    %654 = vmatpush2.bf16.msra.mxu0 0
    %655 = vmatprep.subr.bf16.mxu0 0
    %656 = vmatpush2.bf16.msra.mxu0 0
    %657 = vmatprep.subr.bf16.mxu0 0
    %658 = vmatpush2.bf16.msra.mxu0 0
    %659 = vmatprep.subr.bf16.mxu0 0
    %660 = vmatpush2.bf16.msra.mxu0 0
    %661 = vmatprep.mubr.bf16.mxu0 0
    %662 = vmatmul.mubr.bf16.gmra.mxu0 0
    %v663 = vpop.f32.mrf.mxu0
    %v664 = vadd.f32 0.0, %v663
    %v665 = vpop.f32.mrf.mxu0
    %v666 = vadd.f32 0.0, %v665
    %v667 = vpop.f32.mrf.mxu0
    %v668 = vpop.f32.mrf.mxu0
    %669 = vdwg.mxu0
    %v670 = vadd.f32 %v256, %v623
    %v671 = vadd.f32 %v257, %v625
    %v672 = vadd.f32 %v258, %v664
    %v673 = vadd.f32 %v259, %v666
    %v674 = vtanh.pop %v670
    %v675 = vtanh.pop %v671
    %v676 = vtanh.pop %v672
    %v677 = vtanh.pop %v673
    %v678 = vmul.f32 %v674, 0.5
    %v679 = vmul.f32 %v675, 0.5
    %v680 = vmul.f32 %v676, 0.5
    %v681 = vadd.f32 %v678, 0.5
    %v682 = vadd.f32 %v679, 0.5
    %v683 = vadd.f32 %v680, 0.5
    %v684 = vmul.f32 %v682, 0.0
    %v685 = vmul.f32 %v681, %v677
    %v686 = vadd.f32 %v684, %v685
    %v687 = vtanh.pop %v686
    %v688 = vmul.f32 %v683, %v687
    %v689 = vpack.c.bf16 %v688, %v688
    %690 = vmatprep.subr.bf16.mxu0 %v553
    %691 = vmatpush1.bf16.msra.mxu0 %v552
    %692 = vmatprep.subr.bf16.mxu0 %v549
    %693 = vmatpush1.bf16.msra.mxu0 %v548
    %694 = vmatprep.subr.bf16.mxu0 %v545
    %695 = vmatpush1.bf16.msra.mxu0 %v544
    %696 = vmatprep.subr.bf16.mxu0 %v541
    %697 = vmatpush1.bf16.msra.mxu0 %v540
    %698 = vmatprep.subr.bf16.mxu0 %v537
    %699 = vmatpush1.bf16.msra.mxu0 %v536
    %700 = vmatprep.subr.bf16.mxu0 %v533
    %701 = vmatpush1.bf16.msra.mxu0 %v532
    %702 = vmatprep.subr.bf16.mxu0 %v529
    %703 = vmatpush1.bf16.msra.mxu0 %v528
    %704 = vmatprep.subr.bf16.mxu0 %v525
    %705 = vmatpush1.bf16.msra.mxu0 %v524
    %706 = vmatprep.subr.bf16.mxu0 0
    %707 = vmatpush2.bf16.msra.mxu0 0
    %708 = vmatprep.subr.bf16.mxu0 0
    %709 = vmatpush2.bf16.msra.mxu0 0
    %710 = vmatprep.subr.bf16.mxu0 0
    %711 = vmatpush2.bf16.msra.mxu0 0
    %712 = vmatprep.subr.bf16.mxu0 0
    %713 = vmatpush2.bf16.msra.mxu0 0
    %714 = vmatprep.subr.bf16.mxu0 0
    %715 = vmatpush2.bf16.msra.mxu0 0
    %716 = vmatprep.subr.bf16.mxu0 0
    %717 = vmatpush2.bf16.msra.mxu0 0
    %718 = vmatprep.subr.bf16.mxu0 0
    %719 = vmatpush2.bf16.msra.mxu0 0
    %720 = vmatprep.subr.bf16.mxu0 0
    %721 = vmatpush2.bf16.msra.mxu0 0
    %722 = vmatprep.mubr.bf16.mxu0 0
    %723 = vmatmul.mubr.bf16.gmra.mxu0 %v689
    %v724 = vpop.f32.mrf.mxu0
    %v725 = vadd.f32 0.0, %v724
    %v726 = vpop.f32.mrf.mxu0
    %v727 = vadd.f32 0.0, %v726
    %v728 = vpop.f32.mrf.mxu0
    %v729 = vpop.f32.mrf.mxu0
    %730 = vdwg.mxu0
    %731 = vmatprep.subr.bf16.mxu0 %v555
    %732 = vmatpush1.bf16.msra.mxu0 %v554
    %733 = vmatprep.subr.bf16.mxu0 %v551
    %734 = vmatpush1.bf16.msra.mxu0 %v550
    %735 = vmatprep.subr.bf16.mxu0 %v547
    %736 = vmatpush1.bf16.msra.mxu0 %v546
    %737 = vmatprep.subr.bf16.mxu0 %v543
    %738 = vmatpush1.bf16.msra.mxu0 %v542
    %739 = vmatprep.subr.bf16.mxu0 %v539
    %740 = vmatpush1.bf16.msra.mxu0 %v538
    %741 = vmatprep.subr.bf16.mxu0 %v535
    %742 = vmatpush1.bf16.msra.mxu0 %v534
    %743 = vmatprep.subr.bf16.mxu0 %v531
    %744 = vmatpush1.bf16.msra.mxu0 %v530
    %745 = vmatprep.subr.bf16.mxu0 %v527
    %746 = vmatpush1.bf16.msra.mxu0 %v526
    %747 = vmatprep.subr.bf16.mxu0 0
    %748 = vmatpush2.bf16.msra.mxu0 0
    %749 = vmatprep.subr.bf16.mxu0 0
    %750 = vmatpush2.bf16.msra.mxu0 0
    %751 = vmatprep.subr.bf16.mxu0 0
    %752 = vmatpush2.bf16.msra.mxu0 0
    %753 = vmatprep.subr.bf16.mxu0 0
    %754 = vmatpush2.bf16.msra.mxu0 0
    %755 = vmatprep.subr.bf16.mxu0 0
    %756 = vmatpush2.bf16.msra.mxu0 0
    %757 = vmatprep.subr.bf16.mxu0 0
    %758 = vmatpush2.bf16.msra.mxu0 0
    %759 = vmatprep.subr.bf16.mxu0 0
    %760 = vmatpush2.bf16.msra.mxu0 0
    %761 = vmatprep.subr.bf16.mxu0 0
    %762 = vmatpush2.bf16.msra.mxu0 0
    %763 = vmatprep.mubr.bf16.mxu0 0
    %764 = vmatmul.mubr.bf16.gmra.mxu0 %v689
    %v765 = vpop.f32.mrf.mxu0
    %v766 = vadd.f32 0.0, %v765
    %v767 = vpop.f32.mrf.mxu0
    %v768 = vadd.f32 0.0, %v767
    %v769 = vpop.f32.mrf.mxu0
    %v770 = vpop.f32.mrf.mxu0
    %771 = vdwg.mxu0
    %v772 = vadd.f32 %v272, %v725
    %v773 = vadd.f32 %v273, %v727
    %v774 = vadd.f32 %v274, %v766
    %v775 = vadd.f32 %v275, %v768
    %v776 = vtanh.pop %v772
    %v777 = vtanh.pop %v773
    %v778 = vtanh.pop %v774
    %v779 = vtanh.pop %v775
    %v780 = vmul.f32 %v776, 0.5
    %v781 = vmul.f32 %v777, 0.5
    %v782 = vmul.f32 %v778, 0.5
    %v783 = vadd.f32 %v780, 0.5
    %v784 = vadd.f32 %v781, 0.5
    %v785 = vadd.f32 %v782, 0.5
    %v786 = vmul.f32 %v784, %v686
    %v787 = vmul.f32 %v783, %v779
    %v788 = vadd.f32 %v786, %v787
    %v789 = vtanh.pop %v788
    %v790 = vmul.f32 %v785, %v789
    %v791 = vpack.c.bf16 %v790, %v790
    %792 = vmatprep.subr.bf16.mxu0 %v553
    %793 = vmatpush1.bf16.msra.mxu0 %v552
    %794 = vmatprep.subr.bf16.mxu0 %v549
    %795 = vmatpush1.bf16.msra.mxu0 %v548
    %796 = vmatprep.subr.bf16.mxu0 %v545
    %797 = vmatpush1.bf16.msra.mxu0 %v544
    %798 = vmatprep.subr.bf16.mxu0 %v541
    %799 = vmatpush1.bf16.msra.mxu0 %v540
    %800 = vmatprep.subr.bf16.mxu0 %v537
    %801 = vmatpush1.bf16.msra.mxu0 %v536
    %802 = vmatprep.subr.bf16.mxu0 %v533
    %803 = vmatpush1.bf16.msra.mxu0 %v532
    %804 = vmatprep.subr.bf16.mxu0 %v529
    %805 = vmatpush1.bf16.msra.mxu0 %v528
    %806 = vmatprep.subr.bf16.mxu0 %v525
    %807 = vmatpush1.bf16.msra.mxu0 %v524
    %808 = vmatprep.subr.bf16.mxu0 0
    %809 = vmatpush2.bf16.msra.mxu0 0
    %810 = vmatprep.subr.bf16.mxu0 0
    %811 = vmatpush2.bf16.msra.mxu0 0
    %812 = vmatprep.subr.bf16.mxu0 0
    %813 = vmatpush2.bf16.msra.mxu0 0
    %814 = vmatprep.subr.bf16.mxu0 0
    %815 = vmatpush2.bf16.msra.mxu0 0
    %816 = vmatprep.subr.bf16.mxu0 0
    %817 = vmatpush2.bf16.msra.mxu0 0
    %818 = vmatprep.subr.bf16.mxu0 0
    %819 = vmatpush2.bf16.msra.mxu0 0
    %820 = vmatprep.subr.bf16.mxu0 0
    %821 = vmatpush2.bf16.msra.mxu0 0
    %822 = vmatprep.subr.bf16.mxu0 0
    %823 = vmatpush2.bf16.msra.mxu0 0
    %824 = vmatprep.mubr.bf16.mxu0 0
    %825 = vmatmul.mubr.bf16.gmra.mxu0 %v791
    %v826 = vpop.f32.mrf.mxu0
    %v827 = vadd.f32 0.0, %v826
    %v828 = vpop.f32.mrf.mxu0
    %v829 = vadd.f32 0.0, %v828
    %v830 = vpop.f32.mrf.mxu0
    %v831 = vpop.f32.mrf.mxu0
    %832 = vdwg.mxu0
    %833 = vmatprep.subr.bf16.mxu0 %v555
    %834 = vmatpush1.bf16.msra.mxu0 %v554
    %835 = vmatprep.subr.bf16.mxu0 %v551
    %836 = vmatpush1.bf16.msra.mxu0 %v550
    %837 = vmatprep.subr.bf16.mxu0 %v547
    %838 = vmatpush1.bf16.msra.mxu0 %v546
    %839 = vmatprep.subr.bf16.mxu0 %v543
    %840 = vmatpush1.bf16.msra.mxu0 %v542
    %841 = vmatprep.subr.bf16.mxu0 %v539
    %842 = vmatpush1.bf16.msra.mxu0 %v538
    %843 = vmatprep.subr.bf16.mxu0 %v535
    %844 = vmatpush1.bf16.msra.mxu0 %v534
    %845 = vmatprep.subr.bf16.mxu0 %v531
    %846 = vmatpush1.bf16.msra.mxu0 %v530
    %847 = vmatprep.subr.bf16.mxu0 %v527
    %848 = vmatpush1.bf16.msra.mxu0 %v526
    %849 = vmatprep.subr.bf16.mxu0 0
    %850 = vmatpush2.bf16.msra.mxu0 0
    %851 = vmatprep.subr.bf16.mxu0 0
    %852 = vmatpush2.bf16.msra.mxu0 0
    %853 = vmatprep.subr.bf16.mxu0 0
    %854 = vmatpush2.bf16.msra.mxu0 0
    %855 = vmatprep.subr.bf16.mxu0 0
    %856 = vmatpush2.bf16.msra.mxu0 0
    %857 = vmatprep.subr.bf16.mxu0 0
    %858 = vmatpush2.bf16.msra.mxu0 0
    %859 = vmatprep.subr.bf16.mxu0 0
    %860 = vmatpush2.bf16.msra.mxu0 0
    %861 = vmatprep.subr.bf16.mxu0 0
    %862 = vmatpush2.bf16.msra.mxu0 0
    %863 = vmatprep.subr.bf16.mxu0 0
    %864 = vmatpush2.bf16.msra.mxu0 0
    %865 = vmatprep.mubr.bf16.mxu0 0
    %866 = vmatmul.mubr.bf16.gmra.mxu0 %v791
    %v867 = vpop.f32.mrf.mxu0
    %v868 = vadd.f32 0.0, %v867
    %v869 = vpop.f32.mrf.mxu0
    %v870 = vadd.f32 0.0, %v869
    %v871 = vpop.f32.mrf.mxu0
    %v872 = vpop.f32.mrf.mxu0
    %873 = vdwg.mxu0
    %v874 = vadd.f32 %v292, %v827
    %v875 = vadd.f32 %v293, %v829
    %v876 = vadd.f32 %v294, %v868
    %v877 = vadd.f32 %v295, %v870
    %v878 = vtanh.pop %v874
    %v879 = vtanh.pop %v875
    %v880 = vtanh.pop %v876
    %v881 = vtanh.pop %v877
    %v882 = vmul.f32 %v878, 0.5
    %v883 = vmul.f32 %v879, 0.5
    %v884 = vmul.f32 %v880, 0.5
    %v885 = vadd.f32 %v882, 0.5
    %v886 = vadd.f32 %v883, 0.5
    %v887 = vadd.f32 %v884, 0.5
    %v888 = vmul.f32 %v886, %v788
    %v889 = vmul.f32 %v885, %v881
    %v890 = vadd.f32 %v888, %v889
    %v891 = vtanh.pop %v890
    %v892 = vmul.f32 %v887, %v891
    %v893 = vpack.c.bf16 %v892, %v892
    %894 = vmatprep.subr.bf16.mxu0 %v553
    %895 = vmatpush1.bf16.msra.mxu0 %v552
    %896 = vmatprep.subr.bf16.mxu0 %v549
    %897 = vmatpush1.bf16.msra.mxu0 %v548
    %898 = vmatprep.subr.bf16.mxu0 %v545
    %899 = vmatpush1.bf16.msra.mxu0 %v544
    %900 = vmatprep.subr.bf16.mxu0 %v541
    %901 = vmatpush1.bf16.msra.mxu0 %v540
    %902 = vmatprep.subr.bf16.mxu0 %v537
    %903 = vmatpush1.bf16.msra.mxu0 %v536
    %904 = vmatprep.subr.bf16.mxu0 %v533
    %905 = vmatpush1.bf16.msra.mxu0 %v532
    %906 = vmatprep.subr.bf16.mxu0 %v529
    %907 = vmatpush1.bf16.msra.mxu0 %v528
    %908 = vmatprep.subr.bf16.mxu0 %v525
    %909 = vmatpush1.bf16.msra.mxu0 %v524
    %910 = vmatprep.subr.bf16.mxu0 0
    %911 = vmatpush2.bf16.msra.mxu0 0
    %912 = vmatprep.subr.bf16.mxu0 0
    %913 = vmatpush2.bf16.msra.mxu0 0
    %914 = vmatprep.subr.bf16.mxu0 0
    %915 = vmatpush2.bf16.msra.mxu0 0
    %916 = vmatprep.subr.bf16.mxu0 0
    %917 = vmatpush2.bf16.msra.mxu0 0
    %918 = vmatprep.subr.bf16.mxu0 0
    %919 = vmatpush2.bf16.msra.mxu0 0
    %920 = vmatprep.subr.bf16.mxu0 0
    %921 = vmatpush2.bf16.msra.mxu0 0
    %922 = vmatprep.subr.bf16.mxu0 0
    %923 = vmatpush2.bf16.msra.mxu0 0
    %924 = vmatprep.subr.bf16.mxu0 0
    %925 = vmatpush2.bf16.msra.mxu0 0
    %926 = vmatprep.mubr.bf16.mxu0 0
    %927 = vmatmul.mubr.bf16.gmra.mxu0 %v893
    %v928 = vpop.f32.mrf.mxu0
    %v929 = vadd.f32 0.0, %v928
    %v930 = vpop.f32.mrf.mxu0
    %v931 = vadd.f32 0.0, %v930
    %v932 = vpop.f32.mrf.mxu0
    %v933 = vpop.f32.mrf.mxu0
    %934 = vdwg.mxu0
    %935 = vmatprep.subr.bf16.mxu0 %v555
    %936 = vmatpush1.bf16.msra.mxu0 %v554
    %937 = vmatprep.subr.bf16.mxu0 %v551
    %938 = vmatpush1.bf16.msra.mxu0 %v550
    %939 = vmatprep.subr.bf16.mxu0 %v547
    %940 = vmatpush1.bf16.msra.mxu0 %v546
    %941 = vmatprep.subr.bf16.mxu0 %v543
    %942 = vmatpush1.bf16.msra.mxu0 %v542
    %943 = vmatprep.subr.bf16.mxu0 %v539
    %944 = vmatpush1.bf16.msra.mxu0 %v538
    %945 = vmatprep.subr.bf16.mxu0 %v535
    %946 = vmatpush1.bf16.msra.mxu0 %v534
    %947 = vmatprep.subr.bf16.mxu0 %v531
    %948 = vmatpush1.bf16.msra.mxu0 %v530
    %949 = vmatprep.subr.bf16.mxu0 %v527
    %950 = vmatpush1.bf16.msra.mxu0 %v526
    %951 = vmatprep.subr.bf16.mxu0 0
    %952 = vmatpush2.bf16.msra.mxu0 0
    %953 = vmatprep.subr.bf16.mxu0 0
    %954 = vmatpush2.bf16.msra.mxu0 0
    %955 = vmatprep.subr.bf16.mxu0 0
    %956 = vmatpush2.bf16.msra.mxu0 0
    %957 = vmatprep.subr.bf16.mxu0 0
    %958 = vmatpush2.bf16.msra.mxu0 0
    %959 = vmatprep.subr.bf16.mxu0 0
    %960 = vmatpush2.bf16.msra.mxu0 0
    %961 = vmatprep.subr.bf16.mxu0 0
    %962 = vmatpush2.bf16.msra.mxu0 0
    %963 = vmatprep.subr.bf16.mxu0 0
    %964 = vmatpush2.bf16.msra.mxu0 0
    %965 = vmatprep.subr.bf16.mxu0 0
    %966 = vmatpush2.bf16.msra.mxu0 0
    %967 = vmatprep.mubr.bf16.mxu0 0
    %968 = vmatmul.mubr.bf16.gmra.mxu0 %v893
    %v969 = vpop.f32.mrf.mxu0
    %v970 = vadd.f32 0.0, %v969
    %v971 = vpop.f32.mrf.mxu0
    %v972 = vadd.f32 0.0, %v971
    %v973 = vpop.f32.mrf.mxu0
    %v974 = vpop.f32.mrf.mxu0
    %975 = vdwg.mxu0
    %v976 = vadd.f32 %v312, %v929
    %v977 = vadd.f32 %v313, %v931
    %v978 = vadd.f32 %v314, %v970
    %v979 = vadd.f32 %v315, %v972
    %v980 = vtanh.pop %v976
    %v981 = vtanh.pop %v977
    %v982 = vtanh.pop %v978
    %v983 = vtanh.pop %v979
    %v984 = vmul.f32 %v980, 0.5
    %v985 = vmul.f32 %v981, 0.5
    %v986 = vmul.f32 %v982, 0.5
    %v987 = vadd.f32 %v984, 0.5
    %v988 = vadd.f32 %v985, 0.5
    %v989 = vadd.f32 %v986, 0.5
    %v990 = vmul.f32 %v988, %v890
    %v991 = vmul.f32 %v987, %v983
    %v992 = vadd.f32 %v990, %v991
    %v993 = vtanh.pop %v992
    %v994 = vmul.f32 %v989, %v993
    %v995 = vpack.c.bf16 %v994, %v994
    %996 = vmatprep.subr.bf16.mxu0 %v553
    %997 = vmatpush1.bf16.msra.mxu0 %v552
    %998 = vmatprep.subr.bf16.mxu0 %v549
    %999 = vmatpush1.bf16.msra.mxu0 %v548
    %1000 = vmatprep.subr.bf16.mxu0 %v545
    %1001 = vmatpush1.bf16.msra.mxu0 %v544
    %1002 = vmatprep.subr.bf16.mxu0 %v541
    %1003 = vmatpush1.bf16.msra.mxu0 %v540
    %1004 = vmatprep.subr.bf16.mxu0 %v537
    %1005 = vmatpush1.bf16.msra.mxu0 %v536
    %1006 = vmatprep.subr.bf16.mxu0 %v533
    %1007 = vmatpush1.bf16.msra.mxu0 %v532
    %1008 = vmatprep.subr.bf16.mxu0 %v529
    %1009 = vmatpush1.bf16.msra.mxu0 %v528
    %1010 = vmatprep.subr.bf16.mxu0 %v525
    %1011 = vmatpush1.bf16.msra.mxu0 %v524
    %1012 = vmatprep.subr.bf16.mxu0 0
    %1013 = vmatpush2.bf16.msra.mxu0 0
    %1014 = vmatprep.subr.bf16.mxu0 0
    %1015 = vmatpush2.bf16.msra.mxu0 0
    %1016 = vmatprep.subr.bf16.mxu0 0
    %1017 = vmatpush2.bf16.msra.mxu0 0
    %1018 = vmatprep.subr.bf16.mxu0 0
    %1019 = vmatpush2.bf16.msra.mxu0 0
    %1020 = vmatprep.subr.bf16.mxu0 0
    %1021 = vmatpush2.bf16.msra.mxu0 0
    %1022 = vmatprep.subr.bf16.mxu0 0
    %1023 = vmatpush2.bf16.msra.mxu0 0
    %1024 = vmatprep.subr.bf16.mxu0 0
    %1025 = vmatpush2.bf16.msra.mxu0 0
    %1026 = vmatprep.subr.bf16.mxu0 0
    %1027 = vmatpush2.bf16.msra.mxu0 0
    %1028 = vmatprep.mubr.bf16.mxu0 0
    %1029 = vmatmul.mubr.bf16.gmra.mxu0 %v995
    %v1030 = vpop.f32.mrf.mxu0
    %v1031 = vadd.f32 0.0, %v1030
    %v1032 = vpop.f32.mrf.mxu0
    %v1033 = vadd.f32 0.0, %v1032
    %v1034 = vpop.f32.mrf.mxu0
    %v1035 = vpop.f32.mrf.mxu0
    %1036 = vdwg.mxu0
    %1037 = vmatprep.subr.bf16.mxu0 %v555
    %1038 = vmatpush1.bf16.msra.mxu0 %v554
    %1039 = vmatprep.subr.bf16.mxu0 %v551
    %1040 = vmatpush1.bf16.msra.mxu0 %v550
    %1041 = vmatprep.subr.bf16.mxu0 %v547
    %1042 = vmatpush1.bf16.msra.mxu0 %v546
    %1043 = vmatprep.subr.bf16.mxu0 %v543
    %1044 = vmatpush1.bf16.msra.mxu0 %v542
    %1045 = vmatprep.subr.bf16.mxu0 %v539
    %1046 = vmatpush1.bf16.msra.mxu0 %v538
    %1047 = vmatprep.subr.bf16.mxu0 %v535
    %1048 = vmatpush1.bf16.msra.mxu0 %v534
    %1049 = vmatprep.subr.bf16.mxu0 %v531
    %1050 = vmatpush1.bf16.msra.mxu0 %v530
    %1051 = vmatprep.subr.bf16.mxu0 %v527
    %1052 = vmatpush1.bf16.msra.mxu0 %v526
    %1053 = vmatprep.subr.bf16.mxu0 0
    %1054 = vmatpush2.bf16.msra.mxu0 0
    %1055 = vmatprep.subr.bf16.mxu0 0
    %1056 = vmatpush2.bf16.msra.mxu0 0
    %1057 = vmatprep.subr.bf16.mxu0 0
    %1058 = vmatpush2.bf16.msra.mxu0 0
    %1059 = vmatprep.subr.bf16.mxu0 0
    %1060 = vmatpush2.bf16.msra.mxu0 0
    %1061 = vmatprep.subr.bf16.mxu0 0
    %1062 = vmatpush2.bf16.msra.mxu0 0
    %1063 = vmatprep.subr.bf16.mxu0 0
    %1064 = vmatpush2.bf16.msra.mxu0 0
    %1065 = vmatprep.subr.bf16.mxu0 0
    %1066 = vmatpush2.bf16.msra.mxu0 0
    %1067 = vmatprep.subr.bf16.mxu0 0
    %1068 = vmatpush2.bf16.msra.mxu0 0
    %1069 = vmatprep.mubr.bf16.mxu0 0
    %1070 = vmatmul.mubr.bf16.gmra.mxu0 %v995
    %v1071 = vpop.f32.mrf.mxu0
    %v1072 = vadd.f32 0.0, %v1071
    %v1073 = vpop.f32.mrf.mxu0
    %v1074 = vadd.f32 0.0, %v1073
    %v1075 = vpop.f32.mrf.mxu0
    %v1076 = vpop.f32.mrf.mxu0
    %1077 = vdwg.mxu0
    %v1078 = vadd.f32 %v332, %v1031
    %v1079 = vadd.f32 %v333, %v1033
    %v1080 = vadd.f32 %v334, %v1072
    %v1081 = vadd.f32 %v335, %v1074
    %v1082 = vtanh.pop %v1078
    %v1083 = vtanh.pop %v1079
    %v1084 = vtanh.pop %v1080
    %v1085 = vtanh.pop %v1081
    %v1086 = vmul.f32 %v1082, 0.5
    %v1087 = vmul.f32 %v1083, 0.5
    %v1088 = vmul.f32 %v1084, 0.5
    %v1089 = vadd.f32 %v1086, 0.5
    %v1090 = vadd.f32 %v1087, 0.5
    %v1091 = vadd.f32 %v1088, 0.5
    %v1092 = vmul.f32 %v1090, %v992
    %v1093 = vmul.f32 %v1089, %v1085
    %v1094 = vadd.f32 %v1092, %v1093
    %v1095 = vtanh.pop %v1094
    %v1096 = vmul.f32 %v1091, %v1095
    %v1097 = vpack.c.bf16 %v1096, %v1096
    %1098 = vmatprep.subr.bf16.mxu0 %v553
    %1099 = vmatpush1.bf16.msra.mxu0 %v552
    %1100 = vmatprep.subr.bf16.mxu0 %v549
    %1101 = vmatpush1.bf16.msra.mxu0 %v548
    %1102 = vmatprep.subr.bf16.mxu0 %v545
    %1103 = vmatpush1.bf16.msra.mxu0 %v544
    %1104 = vmatprep.subr.bf16.mxu0 %v541
    %1105 = vmatpush1.bf16.msra.mxu0 %v540
    %1106 = vmatprep.subr.bf16.mxu0 %v537
    %1107 = vmatpush1.bf16.msra.mxu0 %v536
    %1108 = vmatprep.subr.bf16.mxu0 %v533
    %1109 = vmatpush1.bf16.msra.mxu0 %v532
    %1110 = vmatprep.subr.bf16.mxu0 %v529
    %1111 = vmatpush1.bf16.msra.mxu0 %v528
    %1112 = vmatprep.subr.bf16.mxu0 %v525
    %1113 = vmatpush1.bf16.msra.mxu0 %v524
    %1114 = vmatprep.subr.bf16.mxu0 0
    %1115 = vmatpush2.bf16.msra.mxu0 0
    %1116 = vmatprep.subr.bf16.mxu0 0
    %1117 = vmatpush2.bf16.msra.mxu0 0
    %1118 = vmatprep.subr.bf16.mxu0 0
    %1119 = vmatpush2.bf16.msra.mxu0 0
    %1120 = vmatprep.subr.bf16.mxu0 0
    %1121 = vmatpush2.bf16.msra.mxu0 0
    %1122 = vmatprep.subr.bf16.mxu0 0
    %1123 = vmatpush2.bf16.msra.mxu0 0
    %1124 = vmatprep.subr.bf16.mxu0 0
    %1125 = vmatpush2.bf16.msra.mxu0 0
    %1126 = vmatprep.subr.bf16.mxu0 0
    %1127 = vmatpush2.bf16.msra.mxu0 0
    %1128 = vmatprep.subr.bf16.mxu0 0
    %1129 = vmatpush2.bf16.msra.mxu0 0
    %1130 = vmatprep.mubr.bf16.mxu0 0
    %1131 = vmatmul.mubr.bf16.gmra.mxu0 %v1097
    %v1132 = vpop.f32.mrf.mxu0
    %v1133 = vadd.f32 0.0, %v1132
    %v1134 = vpop.f32.mrf.mxu0
    %v1135 = vadd.f32 0.0, %v1134
    %v1136 = vpop.f32.mrf.mxu0
    %v1137 = vpop.f32.mrf.mxu0
    %1138 = vdwg.mxu0
    %1139 = vmatprep.subr.bf16.mxu0 %v555
    %1140 = vmatpush1.bf16.msra.mxu0 %v554
    %1141 = vmatprep.subr.bf16.mxu0 %v551
    %1142 = vmatpush1.bf16.msra.mxu0 %v550
    %1143 = vmatprep.subr.bf16.mxu0 %v547
    %1144 = vmatpush1.bf16.msra.mxu0 %v546
    %1145 = vmatprep.subr.bf16.mxu0 %v543
    %1146 = vmatpush1.bf16.msra.mxu0 %v542
    %1147 = vmatprep.subr.bf16.mxu0 %v539
    %1148 = vmatpush1.bf16.msra.mxu0 %v538
    %1149 = vmatprep.subr.bf16.mxu0 %v535
    %1150 = vmatpush1.bf16.msra.mxu0 %v534
    %1151 = vmatprep.subr.bf16.mxu0 %v531
    %1152 = vmatpush1.bf16.msra.mxu0 %v530
    %1153 = vmatprep.subr.bf16.mxu0 %v527
    %1154 = vmatpush1.bf16.msra.mxu0 %v526
    %1155 = vmatprep.subr.bf16.mxu0 0
    %1156 = vmatpush2.bf16.msra.mxu0 0
    %1157 = vmatprep.subr.bf16.mxu0 0
    %1158 = vmatpush2.bf16.msra.mxu0 0
    %1159 = vmatprep.subr.bf16.mxu0 0
    %1160 = vmatpush2.bf16.msra.mxu0 0
    %1161 = vmatprep.subr.bf16.mxu0 0
    %1162 = vmatpush2.bf16.msra.mxu0 0
    %1163 = vmatprep.subr.bf16.mxu0 0
    %1164 = vmatpush2.bf16.msra.mxu0 0
    %1165 = vmatprep.subr.bf16.mxu0 0
    %1166 = vmatpush2.bf16.msra.mxu0 0
    %1167 = vmatprep.subr.bf16.mxu0 0
    %1168 = vmatpush2.bf16.msra.mxu0 0
    %1169 = vmatprep.subr.bf16.mxu0 0
    %1170 = vmatpush2.bf16.msra.mxu0 0
    %1171 = vmatprep.mubr.bf16.mxu0 0
    %1172 = vmatmul.mubr.bf16.gmra.mxu0 %v1097
    %v1173 = vpop.f32.mrf.mxu0
    %v1174 = vadd.f32 0.0, %v1173
    %v1175 = vpop.f32.mrf.mxu0
    %v1176 = vadd.f32 0.0, %v1175
    %v1177 = vpop.f32.mrf.mxu0
    %v1178 = vpop.f32.mrf.mxu0
    %1179 = vdwg.mxu0
    %v1180 = vadd.f32 %v352, %v1133
    %v1181 = vadd.f32 %v353, %v1135
    %v1182 = vadd.f32 %v354, %v1174
    %v1183 = vadd.f32 %v355, %v1176
    %v1184 = vtanh.pop %v1180
    %v1185 = vtanh.pop %v1181
    %v1186 = vtanh.pop %v1182
    %v1187 = vtanh.pop %v1183
    %v1188 = vmul.f32 %v1184, 0.5
    %v1189 = vmul.f32 %v1185, 0.5
    %v1190 = vmul.f32 %v1186, 0.5
    %v1191 = vadd.f32 %v1188, 0.5
    %v1192 = vadd.f32 %v1189, 0.5
    %v1193 = vadd.f32 %v1190, 0.5
    %v1194 = vmul.f32 %v1192, %v1094
    %v1195 = vmul.f32 %v1191, %v1187
    %v1196 = vadd.f32 %v1194, %v1195
    %v1197 = vtanh.pop %v1196
    %v1198 = vmul.f32 %v1193, %v1197
    %v1199 = vpack.c.bf16 %v1198, %v1198
    %1200 = vmatprep.subr.bf16.mxu0 %v553
    %1201 = vmatpush1.bf16.msra.mxu0 %v552
    %1202 = vmatprep.subr.bf16.mxu0 %v549
    %1203 = vmatpush1.bf16.msra.mxu0 %v548
    %1204 = vmatprep.subr.bf16.mxu0 %v545
    %1205 = vmatpush1.bf16.msra.mxu0 %v544
    %1206 = vmatprep.subr.bf16.mxu0 %v541
    %1207 = vmatpush1.bf16.msra.mxu0 %v540
    %1208 = vmatprep.subr.bf16.mxu0 %v537
    %1209 = vmatpush1.bf16.msra.mxu0 %v536
    %1210 = vmatprep.subr.bf16.mxu0 %v533
    %1211 = vmatpush1.bf16.msra.mxu0 %v532
    %1212 = vmatprep.subr.bf16.mxu0 %v529
    %1213 = vmatpush1.bf16.msra.mxu0 %v528
    %1214 = vmatprep.subr.bf16.mxu0 %v525
    %1215 = vmatpush1.bf16.msra.mxu0 %v524
    %1216 = vmatprep.subr.bf16.mxu0 0
    %1217 = vmatpush2.bf16.msra.mxu0 0
    %1218 = vmatprep.subr.bf16.mxu0 0
    %1219 = vmatpush2.bf16.msra.mxu0 0
    %1220 = vmatprep.subr.bf16.mxu0 0
    %1221 = vmatpush2.bf16.msra.mxu0 0
    %1222 = vmatprep.subr.bf16.mxu0 0
    %1223 = vmatpush2.bf16.msra.mxu0 0
    %1224 = vmatprep.subr.bf16.mxu0 0
    %1225 = vmatpush2.bf16.msra.mxu0 0
    %1226 = vmatprep.subr.bf16.mxu0 0
    %1227 = vmatpush2.bf16.msra.mxu0 0
    %1228 = vmatprep.subr.bf16.mxu0 0
    %1229 = vmatpush2.bf16.msra.mxu0 0
    %1230 = vmatprep.subr.bf16.mxu0 0
    %1231 = vmatpush2.bf16.msra.mxu0 0
    %1232 = vmatprep.mubr.bf16.mxu0 0
    %1233 = vmatmul.mubr.bf16.gmra.mxu0 %v1199
    %v1234 = vpop.f32.mrf.mxu0
    %v1235 = vadd.f32 0.0, %v1234
    %v1236 = vpop.f32.mrf.mxu0
    %v1237 = vadd.f32 0.0, %v1236
    %v1238 = vpop.f32.mrf.mxu0
    %v1239 = vpop.f32.mrf.mxu0
    %1240 = vdwg.mxu0
    %1241 = vmatprep.subr.bf16.mxu0 %v555
    %1242 = vmatpush1.bf16.msra.mxu0 %v554
    %1243 = vmatprep.subr.bf16.mxu0 %v551
    %1244 = vmatpush1.bf16.msra.mxu0 %v550
    %1245 = vmatprep.subr.bf16.mxu0 %v547
    %1246 = vmatpush1.bf16.msra.mxu0 %v546
    %1247 = vmatprep.subr.bf16.mxu0 %v543
    %1248 = vmatpush1.bf16.msra.mxu0 %v542
    %1249 = vmatprep.subr.bf16.mxu0 %v539
    %1250 = vmatpush1.bf16.msra.mxu0 %v538
    %1251 = vmatprep.subr.bf16.mxu0 %v535
    %1252 = vmatpush1.bf16.msra.mxu0 %v534
    %1253 = vmatprep.subr.bf16.mxu0 %v531
    %1254 = vmatpush1.bf16.msra.mxu0 %v530
    %1255 = vmatprep.subr.bf16.mxu0 %v527
    %1256 = vmatpush1.bf16.msra.mxu0 %v526
    %1257 = vmatprep.subr.bf16.mxu0 0
    %1258 = vmatpush2.bf16.msra.mxu0 0
    %1259 = vmatprep.subr.bf16.mxu0 0
    %1260 = vmatpush2.bf16.msra.mxu0 0
    %1261 = vmatprep.subr.bf16.mxu0 0
    %1262 = vmatpush2.bf16.msra.mxu0 0
    %1263 = vmatprep.subr.bf16.mxu0 0
    %1264 = vmatpush2.bf16.msra.mxu0 0
    %1265 = vmatprep.subr.bf16.mxu0 0
    %1266 = vmatpush2.bf16.msra.mxu0 0
    %1267 = vmatprep.subr.bf16.mxu0 0
    %1268 = vmatpush2.bf16.msra.mxu0 0
    %1269 = vmatprep.subr.bf16.mxu0 0
    %1270 = vmatpush2.bf16.msra.mxu0 0
    %1271 = vmatprep.subr.bf16.mxu0 0
    %1272 = vmatpush2.bf16.msra.mxu0 0
    %1273 = vmatprep.mubr.bf16.mxu0 0
    %1274 = vmatmul.mubr.bf16.gmra.mxu0 %v1199
    %v1275 = vpop.f32.mrf.mxu0
    %v1276 = vadd.f32 0.0, %v1275
    %v1277 = vpop.f32.mrf.mxu0
    %v1278 = vadd.f32 0.0, %v1277
    %v1279 = vpop.f32.mrf.mxu0
    %v1280 = vpop.f32.mrf.mxu0
    %1281 = vdwg.mxu0
    %v1282 = vadd.f32 %v372, %v1235
    %v1283 = vadd.f32 %v373, %v1237
    %v1284 = vadd.f32 %v374, %v1276
    %v1285 = vadd.f32 %v375, %v1278
    %v1286 = vtanh.pop %v1282
    %v1287 = vtanh.pop %v1283
    %v1288 = vtanh.pop %v1284
    %v1289 = vtanh.pop %v1285
    %v1290 = vmul.f32 %v1286, 0.5
    %v1291 = vmul.f32 %v1287, 0.5
    %v1292 = vmul.f32 %v1288, 0.5
    %v1293 = vadd.f32 %v1290, 0.5
    %v1294 = vadd.f32 %v1291, 0.5
    %v1295 = vadd.f32 %v1292, 0.5
    %v1296 = vmul.f32 %v1294, %v1196
    %v1297 = vmul.f32 %v1293, %v1289
    %v1298 = vadd.f32 %v1296, %v1297
    %v1299 = vtanh.pop %v1298
    %v1300 = vmul.f32 %v1295, %v1299
    %v1301 = vpack.c.bf16 %v1300, %v1300
    %1302 = vmatprep.subr.bf16.mxu0 %v553
    %1303 = vmatpush1.bf16.msra.mxu0 %v552
    %1304 = vmatprep.subr.bf16.mxu0 %v549
    %1305 = vmatpush1.bf16.msra.mxu0 %v548
    %1306 = vmatprep.subr.bf16.mxu0 %v545
    %1307 = vmatpush1.bf16.msra.mxu0 %v544
    %1308 = vmatprep.subr.bf16.mxu0 %v541
    %1309 = vmatpush1.bf16.msra.mxu0 %v540
    %1310 = vmatprep.subr.bf16.mxu0 %v537
    %1311 = vmatpush1.bf16.msra.mxu0 %v536
    %1312 = vmatprep.subr.bf16.mxu0 %v533
    %1313 = vmatpush1.bf16.msra.mxu0 %v532
    %1314 = vmatprep.subr.bf16.mxu0 %v529
    %1315 = vmatpush1.bf16.msra.mxu0 %v528
    %1316 = vmatprep.subr.bf16.mxu0 %v525
    %1317 = vmatpush1.bf16.msra.mxu0 %v524
    %1318 = vmatprep.subr.bf16.mxu0 0
    %1319 = vmatpush2.bf16.msra.mxu0 0
    %1320 = vmatprep.subr.bf16.mxu0 0
    %1321 = vmatpush2.bf16.msra.mxu0 0
    %1322 = vmatprep.subr.bf16.mxu0 0
    %1323 = vmatpush2.bf16.msra.mxu0 0
    %1324 = vmatprep.subr.bf16.mxu0 0
    %1325 = vmatpush2.bf16.msra.mxu0 0
    %1326 = vmatprep.subr.bf16.mxu0 0
    %1327 = vmatpush2.bf16.msra.mxu0 0
    %1328 = vmatprep.subr.bf16.mxu0 0
    %1329 = vmatpush2.bf16.msra.mxu0 0
    %1330 = vmatprep.subr.bf16.mxu0 0
    %1331 = vmatpush2.bf16.msra.mxu0 0
    %1332 = vmatprep.subr.bf16.mxu0 0
    %1333 = vmatpush2.bf16.msra.mxu0 0
    %1334 = vmatprep.mubr.bf16.mxu0 0
    %1335 = vmatmul.mubr.bf16.gmra.mxu0 %v1301
    %v1336 = vpop.f32.mrf.mxu0
    %v1337 = vadd.f32 0.0, %v1336
    %v1338 = vpop.f32.mrf.mxu0
    %v1339 = vadd.f32 0.0, %v1338
    %v1340 = vpop.f32.mrf.mxu0
    %v1341 = vpop.f32.mrf.mxu0
    %1342 = vdwg.mxu0
    %1343 = vmatprep.subr.bf16.mxu0 %v555
    %1344 = vmatpush1.bf16.msra.mxu0 %v554
    %1345 = vmatprep.subr.bf16.mxu0 %v551
    %1346 = vmatpush1.bf16.msra.mxu0 %v550
    %1347 = vmatprep.subr.bf16.mxu0 %v547
    %1348 = vmatpush1.bf16.msra.mxu0 %v546
    %1349 = vmatprep.subr.bf16.mxu0 %v543
    %1350 = vmatpush1.bf16.msra.mxu0 %v542
    %1351 = vmatprep.subr.bf16.mxu0 %v539
    %1352 = vmatpush1.bf16.msra.mxu0 %v538
    %1353 = vmatprep.subr.bf16.mxu0 %v535
    %1354 = vmatpush1.bf16.msra.mxu0 %v534
    %1355 = vmatprep.subr.bf16.mxu0 %v531
    %1356 = vmatpush1.bf16.msra.mxu0 %v530
    %1357 = vmatprep.subr.bf16.mxu0 %v527
    %1358 = vmatpush1.bf16.msra.mxu0 %v526
    %1359 = vmatprep.subr.bf16.mxu0 0
    %1360 = vmatpush2.bf16.msra.mxu0 0
    %1361 = vmatprep.subr.bf16.mxu0 0
    %1362 = vmatpush2.bf16.msra.mxu0 0
    %1363 = vmatprep.subr.bf16.mxu0 0
    %1364 = vmatpush2.bf16.msra.mxu0 0
    %1365 = vmatprep.subr.bf16.mxu0 0
    %1366 = vmatpush2.bf16.msra.mxu0 0
    %1367 = vmatprep.subr.bf16.mxu0 0
    %1368 = vmatpush2.bf16.msra.mxu0 0
    %1369 = vmatprep.subr.bf16.mxu0 0
    %1370 = vmatpush2.bf16.msra.mxu0 0
    %1371 = vmatprep.subr.bf16.mxu0 0
    %1372 = vmatpush2.bf16.msra.mxu0 0
    %1373 = vmatprep.subr.bf16.mxu0 0
    %1374 = vmatpush2.bf16.msra.mxu0 0
    %1375 = vmatprep.mubr.bf16.mxu0 0
    %1376 = vmatmul.mubr.bf16.gmra.mxu0 %v1301
    %v1377 = vpop.f32.mrf.mxu0
    %v1378 = vadd.f32 0.0, %v1377
    %v1379 = vpop.f32.mrf.mxu0
    %v1380 = vadd.f32 0.0, %v1379
    %v1381 = vpop.f32.mrf.mxu0
    %v1382 = vpop.f32.mrf.mxu0
    %1383 = vdwg.mxu0
    %v1384 = vadd.f32 %v392, %v1337
    %v1385 = vadd.f32 %v393, %v1339
    %v1386 = vadd.f32 %v394, %v1378
    %v1387 = vadd.f32 %v395, %v1380
    %v1388 = vtanh.pop %v1384
    %v1389 = vtanh.pop %v1385
    %v1390 = vtanh.pop %v1386
    %v1391 = vtanh.pop %v1387
    %v1392 = vmul.f32 %v1388, 0.5
    %v1393 = vmul.f32 %v1389, 0.5
    %v1394 = vmul.f32 %v1390, 0.5
    %v1395 = vadd.f32 %v1392, 0.5
    %v1396 = vadd.f32 %v1393, 0.5
    %v1397 = vadd.f32 %v1394, 0.5
    %v1398 = vmul.f32 %v1396, %v1298
    %v1399 = vmul.f32 %v1395, %v1391
    %v1400 = vadd.f32 %v1398, %v1399
    %v1401 = vtanh.pop %v1400
    %v1402 = vmul.f32 %v1397, %v1401
    %v1404 = vrot.slane %v790, 7
    %v1407 = vrot.slane %v892, 6
    %v1410 = vrot.slane %v994, 5
    %v1413 = vrot.slane %v1096, 4
    %v1416 = vrot.slane %v1198, 3
    %v1419 = vrot.slane %v1300, 2
    %v1422 = vrot.slane %v1402, 1
    %v1425 = vrot.slane %v688, 1
    %v1427 = vrot.slane %v892, 7
    %v1429 = vrot.slane %v994, 6
    %v1431 = vrot.slane %v1096, 5
    %v1433 = vrot.slane %v1198, 4
    %v1435 = vrot.slane %v1300, 3
    %v1437 = vrot.slane %v1402, 2
    %v1439 = vsel %vm255, %v688, %v1404
    %vm1440 = vcmask 1041408
    %v1441 = vsel %vm1440, %v1439, %v1407
    %vm1442 = vcmask 1042432
    %v1443 = vsel %vm1442, %v1441, %v1410
    %vm1444 = vcmask 1043456
    %v1445 = vsel %vm1444, %v1443, %v1413
    %vm1446 = vcmask 1044480
    %v1447 = vsel %vm1446, %v1445, %v1416
    %vm1448 = vcmask 1045504
    %v1449 = vsel %vm1448, %v1447, %v1419
    %vm1450 = vcmask 1046528
    %v1451 = vsel %vm1450, %v1449, %v1422
    %v1452 = vsel %vm255, %v1425, %v790
    %v1453 = vsel %vm1440, %v1452, %v1427
    %v1454 = vsel %vm1442, %v1453, %v1429
    %v1455 = vsel %vm1444, %v1454, %v1431
    %v1456 = vsel %vm1446, %v1455, %v1433
    %v1457 = vsel %vm1448, %v1456, %v1435
    %v1458 = vsel %vm1450, %v1457, %v1437
    %v1459 = vpack.c.bf16 %v1458, %v1451
    %v1460 = vld [vmem:[#allocation8] sm:$0xf]
    %v1461 = vld [vmem:[#allocation8 + $0x4] sm:$0xf]
    %v1462 = vld [vmem:[#allocation8 + $0x8] sm:$0xf]
    %v1463 = vld [vmem:[#allocation8 + $0xc] sm:$0xf]
    %v1464 = vld [vmem:[#allocation8 + $0x10] sm:$0xf]
    %v1465 = vld [vmem:[#allocation8 + $0x14] sm:$0xf]
    %v1466 = vld [vmem:[#allocation8 + $0x18] sm:$0xf]
    %v1467 = vld [vmem:[#allocation8 + $0x1c] sm:$0xf]
    %v1468 = vld [vmem:[#allocation8 + $0x20] sm:$0xf]
    %v1469 = vld [vmem:[#allocation8 + $0x24] sm:$0xf]
    %v1470 = vld [vmem:[#allocation8 + $0x28] sm:$0xf]
    %v1471 = vld [vmem:[#allocation8 + $0x2c] sm:$0xf]
    %v1472 = vld [vmem:[#allocation8 + $0x30] sm:$0xf]
    %v1473 = vld [vmem:[#allocation8 + $0x34] sm:$0xf]
    %v1474 = vld [vmem:[#allocation8 + $0x38] sm:$0xf]
    %v1475 = vld [vmem:[#allocation8 + $0x3c] sm:$0xf]
    %v1476 = vld [vmem:[%s5] sm:$0x1]
    %v1478 = vlaneseq
    %v1479 = vshrl.u32 %v1478, 7
    %v1480 = vsub.s32 0, %v1479
    %v1481 = vrot.slane %v1476, %v1480
    %v1499 = vunpack.c.l.b16 %v1460
    %v1500 = vunpack.c.l.b16 %v1461
    %v1501 = vunpack.c.l.b16 %v1462
    %v1502 = vunpack.c.l.b16 %v1463
    %v1503 = vunpack.c.l.b16 %v1464
    %v1504 = vunpack.c.l.b16 %v1465
    %v1505 = vunpack.c.l.b16 %v1466
    %v1506 = vunpack.c.l.b16 %v1467
    %v1507 = vunpack.c.l.b16 %v1468
    %v1508 = vunpack.c.l.b16 %v1469
    %v1509 = vunpack.c.l.b16 %v1470
    %v1510 = vunpack.c.l.b16 %v1471
    %v1511 = vunpack.c.l.b16 %v1472
    %v1512 = vunpack.c.l.b16 %v1473
    %v1513 = vunpack.c.l.b16 %v1474
    %v1514 = vunpack.c.l.b16 %v1475
    %v1515 = vpack.c.b16 %v1500, %v1499
    %v1516 = vpack.c.b16 %v1502, %v1501
    %v1517 = vpack.c.b16 %v1504, %v1503
    %v1518 = vpack.c.b16 %v1506, %v1505
    %v1519 = vpack.c.b16 %v1508, %v1507
    %v1520 = vpack.c.b16 %v1510, %v1509
    %v1521 = vpack.c.b16 %v1512, %v1511
    %v1522 = vpack.c.b16 %v1514, %v1513
    %1531 = vmatprep.subr.bf16.mxu0 0
    %1532 = vmatpush1.bf16.msra.mxu0 %v1522
    %1533 = vmatprep.subr.bf16.mxu0 0
    %1534 = vmatpush1.bf16.msra.mxu0 %v1521
    %1535 = vmatprep.subr.bf16.mxu0 0
    %1536 = vmatpush1.bf16.msra.mxu0 %v1520
    %1537 = vmatprep.subr.bf16.mxu0 0
    %1538 = vmatpush1.bf16.msra.mxu0 %v1519
    %1539 = vmatprep.subr.bf16.mxu0 0
    %1540 = vmatpush1.bf16.msra.mxu0 %v1518
    %1541 = vmatprep.subr.bf16.mxu0 0
    %1542 = vmatpush1.bf16.msra.mxu0 %v1517
    %1543 = vmatprep.subr.bf16.mxu0 0
    %1544 = vmatpush1.bf16.msra.mxu0 %v1516
    %1545 = vmatprep.subr.bf16.mxu0 0
    %1546 = vmatpush1.bf16.msra.mxu0 %v1515
    %1547 = vmatprep.subr.bf16.mxu0 0
    %1548 = vmatpush2.bf16.msra.mxu0 0
    %1549 = vmatprep.subr.bf16.mxu0 0
    %1550 = vmatpush2.bf16.msra.mxu0 0
    %1551 = vmatprep.subr.bf16.mxu0 0
    %1552 = vmatpush2.bf16.msra.mxu0 0
    %1553 = vmatprep.subr.bf16.mxu0 0
    %1554 = vmatpush2.bf16.msra.mxu0 0
    %1555 = vmatprep.subr.bf16.mxu0 0
    %1556 = vmatpush2.bf16.msra.mxu0 0
    %1557 = vmatprep.subr.bf16.mxu0 0
    %1558 = vmatpush2.bf16.msra.mxu0 0
    %1559 = vmatprep.subr.bf16.mxu0 0
    %1560 = vmatpush2.bf16.msra.mxu0 0
    %1561 = vmatprep.subr.bf16.mxu0 0
    %1562 = vmatpush2.bf16.msra.mxu0 0
    %1563 = vmatprep.mubr.bf16.mxu0 0
    %1564 = vmatmul.mubr.bf16.gmra.mxu0 %v1459
    %v1565 = vpop.f32.mrf.mxu0
    %v1566 = vadd.f32 %v1481, %v1565
    %v1567 = vpop.f32.mrf.mxu0
    %v1568 = vpop.f32.mrf.mxu0
    %v1569 = vadd.f32 %v1481, %v1568
    %v1570 = vpop.f32.mrf.mxu0
    %1571 = vdwg.mxu0
    %1572 = vst [vmem:[#allocation10] sm:$0xff] %v1566
    %1573 = vst [vmem:[#allocation10 + $0x8] sm:$0xff] %v1569
    // Predicated region
    $region42: #{decoder_forward.1} parent=1 // pred_check
      _
    $region43: #{decoder_forward.1} parent=1 // pred_check_branch
      %1575 = sbr.rel (0) target = $region45
    $region44: #{decoder_forward.1} parent=1 // pred_region
      %s1577 = ssub.s32 256, 256
      %1578 = vsyncadd [#allocation4], %s1577
      %s1579 = sshll.u32 [#allocation10], 4
      %s1580 = int_to_ptr.vmem [resolvable:$true] %s1579
      %1585 = dma.vmem_to_hbm [thread:$0]  %s1580, 256, %s6, [#allocation4], 128, 128, 8
    $region45: #{decoder_forward.1} parent=1 // pred_fallthru
      _
    // Predicated region
    $region46: #{decoder_forward.1} parent=1 // pred_check
      _
    $region47: #{decoder_forward.1} parent=1 // pred_check_branch
      %1587 = sbr.rel (0) target = $region49
    $region48: #{decoder_forward.1} parent=1 // pred_region
      %1588 = dma.done [#allocation4], 256
    $region49: #{decoder_forward.1} parent=1 // pred_fallthru
      _
    %1589 = vsyncpa [#allocation3], 1
    %1590 = vsyncpa [#allocation6], 1
    %1591 = vsyncpa [#allocation9], 1
    %1592 = vsyncpa [#allocation4], 1

</llo_original>
